<compile_context>
chip_gen: v7x
topology: tpu7x:2x2x1
jax: 0.10.0
libtpu: 0.0.40
codegen_flags: <defaults>
</compile_context>

<pallas_src>
import functools
import math

import jax
import jax.numpy as jnp
from jax import lax
from jax.experimental import pallas as pl
from jax.experimental.pallas import tpu as pltpu


def _round_up(x, m):
    return (x + m - 1) // m * m


def ffn_kernel(ids_ref, slab_ref, bias_ref, out_ref, *, bp, seq_len, kpad, hp):
    """Whole forward pass on full-array VMEM blocks (footprint < 1 MiB)."""
    R = bp * seq_len

    # ---- fused embedding + l0: one-hot with TWO ones per row @ block-diag table
    id1 = ids_ref[0]                                      # (R, 1) int32, q1 ids
    id2 = ids_ref[1]                                      # (R, 1) int32, q2 ids + V
    iota = lax.broadcasted_iota(jnp.int32, (R, kpad), 1)
    hit = jnp.logical_or(iota == id1, iota == id2)
    onehot = jnp.where(hit, 1.0, 0.0).astype(jnp.bfloat16)          # (R, kpad)

    # h[:, :D]  = l0(emb[q1_tok]),  h[:, D:2D] = l0(emb[q2_tok]),  rest = 0
    h = jnp.dot(onehot, slab_ref[0:kpad, :],
                preferred_element_type=jnp.float32)                 # (R, hp) f32
    h = jnp.maximum(h, 0.0)                                         # ReLU (l0)

    # max over the sequence dim -> (bp, hp); lanes 0:2D hold cat(q1_vec, q2_vec)
    pooled = jnp.max(h.reshape(bp, seq_len, hp), axis=1)

    bias = bias_ref[...]                                            # (8, hp) f32

    # ---- 4-layer MLP (Linear + ReLU); single K=2D contraction for layer 0 ----
    m = pooled.astype(jnp.bfloat16)
    for i in range(4):
        off = kpad + i * hp
        acc = jnp.dot(m, slab_ref[off:off + hp, :],
                      preferred_element_type=jnp.float32)
        acc = jnp.maximum(acc + bias[i:i + 1, :], 0.0)
        m = acc.astype(jnp.bfloat16)

    # ---- output head: (8, hp) unmasked, lane-dense store ----
    off = kpad + 4 * hp
    out_ref[...] = (jnp.dot(m, slab_ref[off:off + hp, :],
                            preferred_element_type=jnp.float32)
                    + bias[4:5, :])


def init_params(key, vocab_size, embedding_dim, n_classes, hidden=200):
    ks = jax.random.split(key, 7)
    D, V = embedding_dim, vocab_size
    out_dim = 1 if n_classes == 2 else n_classes
    HP = max(_round_up(2 * D, 128), _round_up(hidden, 128), _round_up(out_dim, 128))
    KPAD = _round_up(2 * V, 128)

    def linear(k, fan_in, fan_out):
        kw, kb = jax.random.split(k)
        bound = 1.0 / math.sqrt(float(fan_in))
        w = jax.random.uniform(kw, (fan_in, fan_out), jnp.float32, -bound, bound)
        b = jax.random.uniform(kb, (fan_out,), jnp.float32, -bound, bound)
        return w, b

    # frozen word embedding table (deterministic, synthetic)
    emb = jax.random.normal(ks[0], (V, D), jnp.float32)
    w0, b0 = linear(ks[1], D, D)                       # l0: Linear(D, D)
    wl0, bl0 = linear(ks[2], 2 * D, hidden)            # ll layer 0: 2D -> 200
    wl1, bl1 = linear(ks[3], hidden, hidden)
    wl2, bl2 = linear(ks[4], hidden, hidden)
    wl3, bl3 = linear(ks[5], hidden, hidden)
    wo, bo = linear(ks[6], hidden, out_dim)            # output head

    # ---- fold l0 into the table, build block-diagonal (2V, 2D) layout ----
    fused = emb @ w0 + b0[None, :]                     # (V, D), exact fold
    table = jnp.zeros((KPAD, HP), jnp.float32)
    table = table.at[:V, :D].set(fused)                # q1 block
    table = table.at[V:2 * V, D:2 * D].set(fused)      # q2 block

    def pad_w(w):
        r, c = w.shape
        return jnp.zeros((HP, HP), jnp.float32).at[:r, :c].set(w)

    # single bf16 weight slab: [table | W1 | W2 | W3 | W4 | Wout]
    slab = jnp.concatenate(
        [table, pad_w(wl0), pad_w(wl1), pad_w(wl2), pad_w(wl3), pad_w(wo)], axis=0)

    bias = (jnp.zeros((8, HP), jnp.float32)
            .at[0, :hidden].set(bl0).at[1, :hidden].set(bl1)
            .at[2, :hidden].set(bl2).at[3, :hidden].set(bl3)
            .at[4, :out_dim].set(bo))

    return {
        'slab': slab.astype(jnp.bfloat16),
        'bias': bias,
        'vocab': V, 'kpad': KPAD, 'hp': HP,
        'n_classes': n_classes, 'out_dim': out_dim,
    }


def ffn_forward(params, q1_ids, q2_ids):
    B, L = q1_ids.shape
    V, KPAD, HP = params['vocab'], params['kpad'], params['hp']
    BP = _round_up(max(B, 8), 8)          # pad batch to a full sublane tile

    q1p = jnp.pad(q1_ids.astype(jnp.int32), ((0, BP - B), (0, 0)))
    q2p = jnp.pad(q2_ids.astype(jnp.int32), ((0, BP - B), (0, 0)))
    # q2 ids are pre-offset by V so they index the second block of the table
    ids = jnp.stack([q1p, q2p + V], axis=0).reshape(2, BP * L, 1)

    kernel = functools.partial(ffn_kernel, bp=BP, seq_len=L, kpad=KPAD, hp=HP)
    vmem = pl.BlockSpec(memory_space=pltpu.MemorySpace.VMEM)
    out = pl.pallas_call(
        kernel,
        out_shape=jax.ShapeDtypeStruct((BP, HP), jnp.float32),
        in_specs=[vmem, vmem, vmem],
        out_specs=vmem,
        compiler_params=pltpu.CompilerParams(vmem_limit_bytes=32 * 1024 * 1024),
    )(ids, params['slab'], params['bias'])

    out = out[:B, :params['out_dim']]
    if params['n_classes'] == 2:
        return out[:, 0]                  # .squeeze(-1) -> (B,)
    return out


if __name__ == "__main__":
    key = jax.random.PRNGKey(0)
    k_params, k_q1, k_q2 = jax.random.split(key, 3)

    VOCAB = 50
    EMB_DIM = 32
    SEQ = 8          # keep a multiple of 8 so the seq-max reshape stays tile-aligned
    BATCH = 2
    N_CLASSES = 2

    params = init_params(k_params, VOCAB, EMB_DIM, N_CLASSES)

    q1_ids = jax.random.randint(k_q1, (BATCH, SEQ), 0, VOCAB, dtype=jnp.int32)
    q2_ids = jax.random.randint(k_q2, (BATCH, SEQ), 0, VOCAB, dtype=jnp.int32)
    # q1_char / q2_char are unused by the reference forward pass.

    out = ffn_forward(params, q1_ids, q2_ids)
    jax.block_until_ready(out)
    assert out.shape == (BATCH,), out.shape
    print("KERNEL_OK")
</pallas_src>

<mosaic_0001>
module attributes {stable_mosaic.version = 11 : i64} {
  func.func @ffn_kernel(%arg0: memref<2x64x1xi32, #tpu.memory_space<vmem>>, %arg1: memref<1408x256xbf16, #tpu.memory_space<vmem>>, %arg2: memref<8x256xf32, #tpu.memory_space<vmem>>, %arg3: memref<8x256xf32, #tpu.memory_space<vmem>>) attributes {dimension_semantics = [], scalar_prefetch = 0 : i64, scratch_operands = 0 : i64, tpu.core_type = #tpu.core_type<tc>} {
    %c0 = arith.constant 0 : index
    %c0_0 = arith.constant 0 : index
    %c0_1 = arith.constant 0 : index
    %0 = vector.load %arg0[%c0, %c0_0, %c0_1] : memref<2x64x1xi32, #tpu.memory_space<vmem>>, vector<1x64x1xi32>
    %1 = vector.shape_cast %0 : vector<1x64x1xi32> to vector<64x1xi32>
    %c1 = arith.constant 1 : index
    %c0_2 = arith.constant 0 : index
    %c0_3 = arith.constant 0 : index
    %2 = vector.load %arg0[%c1, %c0_2, %c0_3] : memref<2x64x1xi32, #tpu.memory_space<vmem>>, vector<1x64x1xi32>
    %3 = vector.shape_cast %2 : vector<1x64x1xi32> to vector<64x1xi32>
    %4 = tpu.iota {dimensions = array<i32: 1>} : vector<64x128xi32>
    %5 = vector.broadcast %1 : vector<64x1xi32> to vector<64x128xi32>
    %6 = arith.cmpi eq, %4, %5 : vector<64x128xi32>
    %7 = vector.broadcast %3 : vector<64x1xi32> to vector<64x128xi32>
    %8 = arith.cmpi eq, %4, %7 : vector<64x128xi32>
    %9 = arith.ori %6, %8 : vector<64x128xi1>
    %cst = arith.constant 1.000000e+00 : f32
    %cst_4 = arith.constant 0.000000e+00 : f32
    %10 = vector.broadcast %cst : f32 to vector<64x128xf32>
    %11 = vector.broadcast %cst_4 : f32 to vector<64x128xf32>
    %12 = arith.select %9, %10, %11 : vector<64x128xi1>, vector<64x128xf32>
    %13 = arith.truncf %12 : vector<64x128xf32> to vector<64x128xbf16>
    %c0_5 = arith.constant 0 : index
    %c0_6 = arith.constant 0 : index
    %14 = vector.load %arg1[%c0_5, %c0_6] : memref<1408x256xbf16, #tpu.memory_space<vmem>>, vector<128x256xbf16>
    %cst_7 = arith.constant dense<0.000000e+00> : vector<64x256xf32>
    %15 = tpu.matmul %13, %14, %cst_7 {dimension_numbers = #tpu.dot_dimension_numbers<[1], [0], [0], [1], [0, 0, 1, 1], [], []>} : vector<64x128xbf16>, vector<128x256xbf16>, vector<64x256xf32> -> vector<64x256xf32>
    %cst_8 = arith.constant 0.000000e+00 : f32
    %16 = vector.broadcast %cst_8 : f32 to vector<64x256xf32>
    %17 = arith.maximumf %15, %16 : vector<64x256xf32>
    %18 = vector.shape_cast %17 : vector<64x256xf32> to vector<8x8x256xf32>
    %cst_9 = arith.constant dense<0xFF800000> : vector<8x256xf32>
    %19 = vector.multi_reduction <maximumf>, %18, %cst_9 [1] : vector<8x8x256xf32> to vector<8x256xf32>
    %c0_10 = arith.constant 0 : index
    %c0_11 = arith.constant 0 : index
    %20 = vector.load %arg2[%c0_10, %c0_11] : memref<8x256xf32, #tpu.memory_space<vmem>>, vector<8x256xf32>
    %21 = arith.truncf %19 : vector<8x256xf32> to vector<8x256xbf16>
    %c128 = arith.constant 128 : index
    %c0_12 = arith.constant 0 : index
    %22 = vector.load %arg1[%c128, %c0_12] : memref<1408x256xbf16, #tpu.memory_space<vmem>>, vector<256x256xbf16>
    %cst_13 = arith.constant dense<0.000000e+00> : vector<8x256xf32>
    %23 = tpu.matmul %21, %22, %cst_13 {dimension_numbers = #tpu.dot_dimension_numbers<[1], [0], [0], [1], [0, 0, 1, 1], [], []>} : vector<8x256xbf16>, vector<256x256xbf16>, vector<8x256xf32> -> vector<8x256xf32>
    %24 = vector.extract_strided_slice %20 {offsets = [0, 0], sizes = [1, 256], strides = [1, 1]} : vector<8x256xf32> to vector<1x256xf32>
    %25 = vector.broadcast %24 : vector<1x256xf32> to vector<8x256xf32>
    %26 = arith.addf %23, %25 : vector<8x256xf32>
    %cst_14 = arith.constant 0.000000e+00 : f32
    %27 = vector.broadcast %cst_14 : f32 to vector<8x256xf32>
    %28 = arith.maximumf %26, %27 : vector<8x256xf32>
    %29 = arith.truncf %28 : vector<8x256xf32> to vector<8x256xbf16>
    %c384 = arith.constant 384 : index
    %c0_15 = arith.constant 0 : index
    %30 = vector.load %arg1[%c384, %c0_15] : memref<1408x256xbf16, #tpu.memory_space<vmem>>, vector<256x256xbf16>
    %cst_16 = arith.constant dense<0.000000e+00> : vector<8x256xf32>
    %31 = tpu.matmul %29, %30, %cst_16 {dimension_numbers = #tpu.dot_dimension_numbers<[1], [0], [0], [1], [0, 0, 1, 1], [], []>} : vector<8x256xbf16>, vector<256x256xbf16>, vector<8x256xf32> -> vector<8x256xf32>
    %32 = vector.extract_strided_slice %20 {offsets = [1, 0], sizes = [1, 256], strides = [1, 1]} : vector<8x256xf32> to vector<1x256xf32>
    %33 = vector.broadcast %32 : vector<1x256xf32> to vector<8x256xf32>
    %34 = arith.addf %31, %33 : vector<8x256xf32>
    %cst_17 = arith.constant 0.000000e+00 : f32
    %35 = vector.broadcast %cst_17 : f32 to vector<8x256xf32>
    %36 = arith.maximumf %34, %35 : vector<8x256xf32>
    %37 = arith.truncf %36 : vector<8x256xf32> to vector<8x256xbf16>
    %c640 = arith.constant 640 : index
    %c0_18 = arith.constant 0 : index
    %38 = vector.load %arg1[%c640, %c0_18] : memref<1408x256xbf16, #tpu.memory_space<vmem>>, vector<256x256xbf16>
    %cst_19 = arith.constant dense<0.000000e+00> : vector<8x256xf32>
    %39 = tpu.matmul %37, %38, %cst_19 {dimension_numbers = #tpu.dot_dimension_numbers<[1], [0], [0], [1], [0, 0, 1, 1], [], []>} : vector<8x256xbf16>, vector<256x256xbf16>, vector<8x256xf32> -> vector<8x256xf32>
    %40 = vector.extract_strided_slice %20 {offsets = [2, 0], sizes = [1, 256], strides = [1, 1]} : vector<8x256xf32> to vector<1x256xf32>
    %41 = vector.broadcast %40 : vector<1x256xf32> to vector<8x256xf32>
    %42 = arith.addf %39, %41 : vector<8x256xf32>
    %cst_20 = arith.constant 0.000000e+00 : f32
    %43 = vector.broadcast %cst_20 : f32 to vector<8x256xf32>
    %44 = arith.maximumf %42, %43 : vector<8x256xf32>
    %45 = arith.truncf %44 : vector<8x256xf32> to vector<8x256xbf16>
    %c896 = arith.constant 896 : index
    %c0_21 = arith.constant 0 : index
    %46 = vector.load %arg1[%c896, %c0_21] : memref<1408x256xbf16, #tpu.memory_space<vmem>>, vector<256x256xbf16>
    %cst_22 = arith.constant dense<0.000000e+00> : vector<8x256xf32>
    %47 = tpu.matmul %45, %46, %cst_22 {dimension_numbers = #tpu.dot_dimension_numbers<[1], [0], [0], [1], [0, 0, 1, 1], [], []>} : vector<8x256xbf16>, vector<256x256xbf16>, vector<8x256xf32> -> vector<8x256xf32>
    %48 = vector.extract_strided_slice %20 {offsets = [3, 0], sizes = [1, 256], strides = [1, 1]} : vector<8x256xf32> to vector<1x256xf32>
    %49 = vector.broadcast %48 : vector<1x256xf32> to vector<8x256xf32>
    %50 = arith.addf %47, %49 : vector<8x256xf32>
    %cst_23 = arith.constant 0.000000e+00 : f32
    %51 = vector.broadcast %cst_23 : f32 to vector<8x256xf32>
    %52 = arith.maximumf %50, %51 : vector<8x256xf32>
    %53 = arith.truncf %52 : vector<8x256xf32> to vector<8x256xbf16>
    %c1152 = arith.constant 1152 : index
    %c0_24 = arith.constant 0 : index
    %54 = vector.load %arg1[%c1152, %c0_24] : memref<1408x256xbf16, #tpu.memory_space<vmem>>, vector<256x256xbf16>
    %cst_25 = arith.constant dense<0.000000e+00> : vector<8x256xf32>
    %55 = tpu.matmul %53, %54, %cst_25 {dimension_numbers = #tpu.dot_dimension_numbers<[1], [0], [0], [1], [0, 0, 1, 1], [], []>} : vector<8x256xbf16>, vector<256x256xbf16>, vector<8x256xf32> -> vector<8x256xf32>
    %56 = vector.extract_strided_slice %20 {offsets = [4, 0], sizes = [1, 256], strides = [1, 1]} : vector<8x256xf32> to vector<1x256xf32>
    %57 = vector.broadcast %56 : vector<1x256xf32> to vector<8x256xf32>
    %58 = arith.addf %55, %57 : vector<8x256xf32>
    %c0_26 = arith.constant 0 : index
    %c0_27 = arith.constant 0 : index
    %59 = vector.load %arg3[%c0_26, %c0_27] : memref<8x256xf32, #tpu.memory_space<vmem>>, vector<8x256xf32>
    tpu.vector_store %arg3[%c0_26, %c0_27], %58 {strides = array<i32>} : memref<8x256xf32, #tpu.memory_space<vmem>>, vector<8x256xf32>,
    return
  }
}

</mosaic_0001>

<llo_original>
// kernel: tpu_custom_call.1
$region0: #{tpu_custom_call.1}
  #allocation0 [shape = 'u32[]', space=smem, size = 0x4, offset = 0x4, fixed_abs, tag = 'smem constant byte address 0x4 - core index']
  #allocation1 [shape = 'u32[144,128]{1,0:T(1,128)}', space=vmem, size = 0x12000, scoped, tag = 'internal scratch']
  %s0 = inlined_call_operand.vmem [shape: s32[2,64,1], index: 0, kind: input, shape index: {}]
  %s1 = inlined_call_operand.hbm [shape: bf16[1408,256], index: 1, kind: input, shape index: {}]
  %s2 = inlined_call_operand.vmem [shape: f32[8,256], index: 2, kind: input, shape index: {}]
  %s3 = inlined_call_operand.hbm [shape: f32[8,256], index: 3, kind: output, shape index: {}]
  %s4 = sld [smem:[#allocation0]]
  $region26: #{tpu_custom_call.1} parent=0
    _
  %s6 = ssub.s32 1, %s4
  %s7 = scalar_select 0, %s6, %s4
  $region1: #{tpu_custom_call.1} parent=0
    #allocation2 [shape = 'u8[720896]{0}', space=vmem, size = 0xb0000, scoped, tag = 'input window, operand 1, single buffered']
    #allocation3 [shape = 's32[1]{0}', space=sflag, size = 0x4, scoped, tag = 'scoped memory for tpu_custom_call.1']
    #allocation4 [shape = 's32[1]{0}', space=sflag, size = 0x4, scoped, tag = 'scoped memory for tpu_custom_call.1']
    #allocation5 [shape = 'u8[8192]{0}', space=vmem, size = 0x2000, scoped, tag = 'output window, operand 0, single buffered']
    %8 = vsyncpa [#allocation3], 0
    %9 = vsyncpa [#allocation4], 0
    // Predicated region
    $region2: #{tpu_custom_call.1} parent=1 // pred_check
      _
    $region3: #{tpu_custom_call.1} parent=1 // pred_check_branch
      %11 = sbr.rel (0) target = $region5
    $region4: #{tpu_custom_call.1} parent=1 // pred_region
      _
    $region5: #{tpu_custom_call.1} parent=1 // pred_fallthru
      _
    // Predicated region
    $region6: #{tpu_custom_call.1} parent=1 // pred_check
      _
    $region7: #{tpu_custom_call.1} parent=1 // pred_check_branch
      %13 = sbr.rel (0) target = $region9
    $region8: #{tpu_custom_call.1} parent=1 // pred_region
      %s15 = ssub.s32 22528, 22528
      %16 = vsyncadd [#allocation3], %s15
      %s17 = sshll.u32 [#allocation2], 4
      %s18 = int_to_ptr.vmem [resolvable:$true] %s17
      %23 = dma.hbm_to_vmem [thread:$0]  %s1, 22528, %s18, [#allocation3], 128, 128, 8
    $region9: #{tpu_custom_call.1} parent=1 // pred_fallthru
      _
    // Predicated region
    $region10: #{tpu_custom_call.1} parent=1 // pred_check
      _
    $region11: #{tpu_custom_call.1} parent=1 // pred_check_branch
      %25 = sbr.rel (0) target = $region13
    $region12: #{tpu_custom_call.1} parent=1 // pred_region
      _
    $region13: #{tpu_custom_call.1} parent=1 // pred_fallthru
      _
    // Predicated region
    $region14: #{tpu_custom_call.1} parent=1 // pred_check
      _
    $region15: #{tpu_custom_call.1} parent=1 // pred_check_branch
      %27 = sbr.rel (0) target = $region17
    $region16: #{tpu_custom_call.1} parent=1 // pred_region
      %28 = dma.done [#allocation3], 22528
    $region17: #{tpu_custom_call.1} parent=1 // pred_fallthru
      _
    %v30 = vld [vmem:[%s0] sm:$0xff]
    %v31 = vld [vmem:[%s0 + $0x8] sm:$0xff]
    %v32 = vld [vmem:[%s0 + $0x10] sm:$0xff]
    %v33 = vld [vmem:[%s0 + $0x18] sm:$0xff]
    %v34 = vld [vmem:[%s0 + $0x20] sm:$0xff]
    %v35 = vld [vmem:[%s0 + $0x28] sm:$0xff]
    %v36 = vld [vmem:[%s0 + $0x30] sm:$0xff]
    %v37 = vld [vmem:[%s0 + $0x38] sm:$0xff]
    %s38 = scalar_lea.vmem %s0, 64
    %v39 = vld [vmem:[%s38] sm:$0xff]
    %v40 = vld [vmem:[%s38 + $0x8] sm:$0xff]
    %v41 = vld [vmem:[%s38 + $0x10] sm:$0xff]
    %v42 = vld [vmem:[%s38 + $0x18] sm:$0xff]
    %v43 = vld [vmem:[%s38 + $0x20] sm:$0xff]
    %v44 = vld [vmem:[%s38 + $0x28] sm:$0xff]
    %v45 = vld [vmem:[%s38 + $0x30] sm:$0xff]
    %v46 = vld [vmem:[%s38 + $0x38] sm:$0xff]
    %v47 = vlaneseq
    %v48 = vand.u32 %v47, 127
    %49 = vset.pattern.permute.xlu0 0
    %50 = vperm.xlu0 %49, %v30
    %v51 = vpop.permute.xlu0 %50
    %52 = vset.pattern.permute.xlu0 0
    %53 = vperm.xlu0 %52, %v31
    %v54 = vpop.permute.xlu0 %53
    %55 = vset.pattern.permute.xlu0 0
    %56 = vperm.xlu0 %55, %v32
    %v57 = vpop.permute.xlu0 %56
    %58 = vset.pattern.permute.xlu0 0
    %59 = vperm.xlu0 %58, %v33
    %v60 = vpop.permute.xlu0 %59
    %61 = vset.pattern.permute.xlu0 0
    %62 = vperm.xlu0 %61, %v34
    %v63 = vpop.permute.xlu0 %62
    %64 = vset.pattern.permute.xlu0 0
    %65 = vperm.xlu0 %64, %v35
    %v66 = vpop.permute.xlu0 %65
    %67 = vset.pattern.permute.xlu0 0
    %68 = vperm.xlu0 %67, %v36
    %v69 = vpop.permute.xlu0 %68
    %70 = vset.pattern.permute.xlu0 0
    %71 = vperm.xlu0 %70, %v37
    %v72 = vpop.permute.xlu0 %71
    %vm73 = vcmp.eq.s32.totalorder %v48, %v51
    %vm74 = vcmp.eq.s32.totalorder %v48, %v54
    %vm75 = vcmp.eq.s32.totalorder %v48, %v57
    %vm76 = vcmp.eq.s32.totalorder %v48, %v60
    %vm77 = vcmp.eq.s32.totalorder %v48, %v63
    %vm78 = vcmp.eq.s32.totalorder %v48, %v66
    %vm79 = vcmp.eq.s32.totalorder %v48, %v69
    %vm80 = vcmp.eq.s32.totalorder %v48, %v72
    %81 = vset.pattern.permute.xlu0 0
    %82 = vperm.xlu0 %81, %v39
    %v83 = vpop.permute.xlu0 %82
    %84 = vset.pattern.permute.xlu0 0
    %85 = vperm.xlu0 %84, %v40
    %v86 = vpop.permute.xlu0 %85
    %87 = vset.pattern.permute.xlu0 0
    %88 = vperm.xlu0 %87, %v41
    %v89 = vpop.permute.xlu0 %88
    %90 = vset.pattern.permute.xlu0 0
    %91 = vperm.xlu0 %90, %v42
    %v92 = vpop.permute.xlu0 %91
    %93 = vset.pattern.permute.xlu0 0
    %94 = vperm.xlu0 %93, %v43
    %v95 = vpop.permute.xlu0 %94
    %96 = vset.pattern.permute.xlu0 0
    %97 = vperm.xlu0 %96, %v44
    %v98 = vpop.permute.xlu0 %97
    %99 = vset.pattern.permute.xlu0 0
    %100 = vperm.xlu0 %99, %v45
    %v101 = vpop.permute.xlu0 %100
    %102 = vset.pattern.permute.xlu0 0
    %103 = vperm.xlu0 %102, %v46
    %v104 = vpop.permute.xlu0 %103
    %vm105 = vcmp.eq.s32.totalorder %v48, %v83
    %vm106 = vcmp.eq.s32.totalorder %v48, %v86
    %vm107 = vcmp.eq.s32.totalorder %v48, %v89
    %vm108 = vcmp.eq.s32.totalorder %v48, %v92
    %vm109 = vcmp.eq.s32.totalorder %v48, %v95
    %vm110 = vcmp.eq.s32.totalorder %v48, %v98
    %vm111 = vcmp.eq.s32.totalorder %v48, %v101
    %vm112 = vcmp.eq.s32.totalorder %v48, %v104
    %vm113 = vmor %vm73, %vm105
    %vm114 = vmor %vm74, %vm106
    %vm115 = vmor %vm75, %vm107
    %vm116 = vmor %vm76, %vm108
    %vm117 = vmor %vm77, %vm109
    %vm118 = vmor %vm78, %vm110
    %vm119 = vmor %vm79, %vm111
    %vm120 = vmor %vm80, %vm112
    %v121 = vsel %vm113, 1.0, 0.0
    %v122 = vsel %vm114, 1.0, 0.0
    %v123 = vsel %vm115, 1.0, 0.0
    %v124 = vsel %vm116, 1.0, 0.0
    %v125 = vsel %vm117, 1.0, 0.0
    %v126 = vsel %vm118, 1.0, 0.0
    %v127 = vsel %vm119, 1.0, 0.0
    %v128 = vsel %vm120, 1.0, 0.0
    %v129 = vpack.c.bf16 %v122, %v121
    %v130 = vpack.c.bf16 %v124, %v123
    %v131 = vpack.c.bf16 %v126, %v125
    %v132 = vpack.c.bf16 %v128, %v127
    %v133 = vld [vmem:[#allocation2] sm:$0xff]
    %v134 = vld [vmem:[#allocation2 + $0x8] sm:$0xff]
    %v135 = vld [vmem:[#allocation2 + $0x10] sm:$0xff]
    %v136 = vld [vmem:[#allocation2 + $0x18] sm:$0xff]
    %v137 = vld [vmem:[#allocation2 + $0x20] sm:$0xff]
    %v138 = vld [vmem:[#allocation2 + $0x28] sm:$0xff]
    %v139 = vld [vmem:[#allocation2 + $0x30] sm:$0xff]
    %v140 = vld [vmem:[#allocation2 + $0x38] sm:$0xff]
    %v141 = vld [vmem:[#allocation2 + $0x40] sm:$0xff]
    %v142 = vld [vmem:[#allocation2 + $0x48] sm:$0xff]
    %v143 = vld [vmem:[#allocation2 + $0x50] sm:$0xff]
    %v144 = vld [vmem:[#allocation2 + $0x58] sm:$0xff]
    %v145 = vld [vmem:[#allocation2 + $0x60] sm:$0xff]
    %v146 = vld [vmem:[#allocation2 + $0x68] sm:$0xff]
    %v147 = vld [vmem:[#allocation2 + $0x70] sm:$0xff]
    %v148 = vld [vmem:[#allocation2 + $0x78] sm:$0xff]
    %v165 = vunpack.c.l.b16 %v133
    %v166 = vunpack.c.h.b16 %v133
    %v167 = vunpack.c.l.b16 %v134
    %v168 = vunpack.c.h.b16 %v134
    %v169 = vunpack.c.l.b16 %v135
    %v170 = vunpack.c.h.b16 %v135
    %v171 = vunpack.c.l.b16 %v136
    %v172 = vunpack.c.h.b16 %v136
    %v173 = vunpack.c.l.b16 %v137
    %v174 = vunpack.c.h.b16 %v137
    %v175 = vunpack.c.l.b16 %v138
    %v176 = vunpack.c.h.b16 %v138
    %v177 = vunpack.c.l.b16 %v139
    %v178 = vunpack.c.h.b16 %v139
    %v179 = vunpack.c.l.b16 %v140
    %v180 = vunpack.c.h.b16 %v140
    %v181 = vunpack.c.l.b16 %v141
    %v182 = vunpack.c.h.b16 %v141
    %v183 = vunpack.c.l.b16 %v142
    %v184 = vunpack.c.h.b16 %v142
    %v185 = vunpack.c.l.b16 %v143
    %v186 = vunpack.c.h.b16 %v143
    %v187 = vunpack.c.l.b16 %v144
    %v188 = vunpack.c.h.b16 %v144
    %v189 = vunpack.c.l.b16 %v145
    %v190 = vunpack.c.h.b16 %v145
    %v191 = vunpack.c.l.b16 %v146
    %v192 = vunpack.c.h.b16 %v146
    %v193 = vunpack.c.l.b16 %v147
    %v194 = vunpack.c.h.b16 %v147
    %v195 = vunpack.c.l.b16 %v148
    %v196 = vunpack.c.h.b16 %v148
    %v197 = vpack.c.b16 %v167, %v165
    %v198 = vpack.c.b16 %v168, %v166
    %v199 = vpack.c.b16 %v171, %v169
    %v200 = vpack.c.b16 %v172, %v170
    %v201 = vpack.c.b16 %v175, %v173
    %v202 = vpack.c.b16 %v176, %v174
    %v203 = vpack.c.b16 %v179, %v177
    %v204 = vpack.c.b16 %v180, %v178
    %v205 = vpack.c.b16 %v183, %v181
    %v206 = vpack.c.b16 %v184, %v182
    %v207 = vpack.c.b16 %v187, %v185
    %v208 = vpack.c.b16 %v188, %v186
    %v209 = vpack.c.b16 %v191, %v189
    %v210 = vpack.c.b16 %v192, %v190
    %v211 = vpack.c.b16 %v195, %v193
    %v212 = vpack.c.b16 %v196, %v194
    %229 = vmatprep.subr.bf16.mxu0 %v198
    %230 = vmatpush1.bf16.msra.mxu0 %v197
    %231 = vmatprep.subr.bf16.mxu0 %v200
    %232 = vmatpush1.bf16.msra.mxu0 %v199
    %233 = vmatprep.subr.bf16.mxu0 %v202
    %234 = vmatpush1.bf16.msra.mxu0 %v201
    %235 = vmatprep.subr.bf16.mxu0 %v204
    %236 = vmatpush1.bf16.msra.mxu0 %v203
    %237 = vmatprep.subr.bf16.mxu0 %v206
    %238 = vmatpush1.bf16.msra.mxu0 %v205
    %239 = vmatprep.subr.bf16.mxu0 %v208
    %240 = vmatpush1.bf16.msra.mxu0 %v207
    %241 = vmatprep.subr.bf16.mxu0 %v210
    %242 = vmatpush1.bf16.msra.mxu0 %v209
    %243 = vmatprep.subr.bf16.mxu0 %v212
    %244 = vmatpush1.bf16.msra.mxu0 %v211
    %245 = vmatprep.subr.bf16.mxu0 0
    %246 = vmatpush1.bf16.msra.mxu0 0
    %247 = vmatprep.subr.bf16.mxu0 0
    %248 = vmatpush1.bf16.msra.mxu0 0
    %249 = vmatprep.subr.bf16.mxu0 0
    %250 = vmatpush1.bf16.msra.mxu0 0
    %251 = vmatprep.subr.bf16.mxu0 0
    %252 = vmatpush1.bf16.msra.mxu0 0
    %253 = vmatprep.subr.bf16.mxu0 0
    %254 = vmatpush1.bf16.msra.mxu0 0
    %255 = vmatprep.subr.bf16.mxu0 0
    %256 = vmatpush1.bf16.msra.mxu0 0
    %257 = vmatprep.subr.bf16.mxu0 0
    %258 = vmatpush1.bf16.msra.mxu0 0
    %259 = vmatprep.subr.bf16.mxu0 0
    %260 = vmatpush1.bf16.msra.mxu0 0
    %261 = vmatprep.mubr.bf16.mxu0 0
    %262 = vmatmul.mubr.bf16.gmra.mrb[0].mxu0 %v129
    %v263 = vpop.f32.mrb[0].mxu0
    %v264 = vadd.f32 0.0, %v263
    %v265 = vpop.f32.mrb[0].mxu0
    %v266 = vadd.f32 0.0, %v265
    %v267 = vpop.f32.mrb[0].mxu0
    %v268 = vadd.f32 0.0, %v267
    %v269 = vpop.f32.mrb[0].mxu0
    %v270 = vadd.f32 0.0, %v269
    %271 = vmatprep.mubr.bf16.mxu0 0
    %272 = vmatmul.mubr.bf16.gmra.mrb[0].mxu0 %v130
    %v273 = vpop.f32.mrb[0].mxu0
    %v274 = vadd.f32 0.0, %v273
    %v275 = vpop.f32.mrb[0].mxu0
    %v276 = vadd.f32 0.0, %v275
    %v277 = vpop.f32.mrb[0].mxu0
    %v278 = vadd.f32 0.0, %v277
    %v279 = vpop.f32.mrb[0].mxu0
    %v280 = vadd.f32 0.0, %v279
    %281 = vmatprep.mubr.bf16.mxu0 0
    %282 = vmatmul.mubr.bf16.gmra.mrb[0].mxu0 %v131
    %v283 = vpop.f32.mrb[0].mxu0
    %v284 = vadd.f32 0.0, %v283
    %v285 = vpop.f32.mrb[0].mxu0
    %v286 = vadd.f32 0.0, %v285
    %v287 = vpop.f32.mrb[0].mxu0
    %v288 = vadd.f32 0.0, %v287
    %v289 = vpop.f32.mrb[0].mxu0
    %v290 = vadd.f32 0.0, %v289
    %291 = vmatprep.mubr.bf16.mxu0 0
    %292 = vmatmul.mubr.bf16.gmra.mrb[0].mxu0 %v132
    %v293 = vpop.f32.mrb[0].mxu0
    %v294 = vadd.f32 0.0, %v293
    %v295 = vpop.f32.mrb[0].mxu0
    %v296 = vadd.f32 0.0, %v295
    %v297 = vpop.f32.mrb[0].mxu0
    %v298 = vadd.f32 0.0, %v297
    %v299 = vpop.f32.mrb[0].mxu0
    %v300 = vadd.f32 0.0, %v299
    %301 = vdwg.mxu0
    %v302 = vmax.f32 %v264, 0.0
    %v303 = vmax.f32 %v266, 0.0
    %v304 = vmax.f32 %v268, 0.0
    %v305 = vmax.f32 %v270, 0.0
    %v306 = vmax.f32 %v274, 0.0
    %v307 = vmax.f32 %v276, 0.0
    %v308 = vmax.f32 %v278, 0.0
    %v309 = vmax.f32 %v280, 0.0
    %v310 = vmax.f32 %v284, 0.0
    %v311 = vmax.f32 %v286, 0.0
    %v312 = vmax.f32 %v288, 0.0
    %v313 = vmax.f32 %v290, 0.0
    %v314 = vmax.f32 %v294, 0.0
    %v315 = vmax.f32 %v296, 0.0
    %v316 = vmax.f32 %v298, 0.0
    %v317 = vmax.f32 %v300, 0.0
    %v318 = vrot.slane %v302, 4
    %v319 = vmax.f32 %v302, %v318
    %v320 = vrot.slane %v319, 2
    %v321 = vmax.f32 %v319, %v320
    %v322 = vrot.slane %v321, 1
    %v323 = vmax.f32 %v321, %v322
    %v324 = vrot.slane %v303, 4
    %v325 = vmax.f32 %v303, %v324
    %v326 = vrot.slane %v325, 2
    %v327 = vmax.f32 %v325, %v326
    %v328 = vrot.slane %v327, 1
    %v329 = vmax.f32 %v327, %v328
    %v330 = vrot.slane %v304, 4
    %v331 = vmax.f32 %v304, %v330
    %v332 = vrot.slane %v331, 2
    %v333 = vmax.f32 %v331, %v332
    %v334 = vrot.slane %v333, 1
    %v335 = vmax.f32 %v333, %v334
    %v336 = vrot.slane %v305, 4
    %v337 = vmax.f32 %v305, %v336
    %v338 = vrot.slane %v337, 2
    %v339 = vmax.f32 %v337, %v338
    %v340 = vrot.slane %v339, 1
    %v341 = vmax.f32 %v339, %v340
    %v342 = vrot.slane %v306, 4
    %v343 = vmax.f32 %v306, %v342
    %v344 = vrot.slane %v343, 2
    %v345 = vmax.f32 %v343, %v344
    %v346 = vrot.slane %v345, 1
    %v347 = vmax.f32 %v345, %v346
    %v348 = vrot.slane %v307, 4
    %v349 = vmax.f32 %v307, %v348
    %v350 = vrot.slane %v349, 2
    %v351 = vmax.f32 %v349, %v350
    %v352 = vrot.slane %v351, 1
    %v353 = vmax.f32 %v351, %v352
    %v354 = vrot.slane %v308, 4
    %v355 = vmax.f32 %v308, %v354
    %v356 = vrot.slane %v355, 2
    %v357 = vmax.f32 %v355, %v356
    %v358 = vrot.slane %v357, 1
    %v359 = vmax.f32 %v357, %v358
    %v360 = vrot.slane %v309, 4
    %v361 = vmax.f32 %v309, %v360
    %v362 = vrot.slane %v361, 2
    %v363 = vmax.f32 %v361, %v362
    %v364 = vrot.slane %v363, 1
    %v365 = vmax.f32 %v363, %v364
    %v366 = vrot.slane %v310, 4
    %v367 = vmax.f32 %v310, %v366
    %v368 = vrot.slane %v367, 2
    %v369 = vmax.f32 %v367, %v368
    %v370 = vrot.slane %v369, 1
    %v371 = vmax.f32 %v369, %v370
    %v372 = vrot.slane %v311, 4
    %v373 = vmax.f32 %v311, %v372
    %v374 = vrot.slane %v373, 2
    %v375 = vmax.f32 %v373, %v374
    %v376 = vrot.slane %v375, 1
    %v377 = vmax.f32 %v375, %v376
    %v378 = vrot.slane %v312, 4
    %v379 = vmax.f32 %v312, %v378
    %v380 = vrot.slane %v379, 2
    %v381 = vmax.f32 %v379, %v380
    %v382 = vrot.slane %v381, 1
    %v383 = vmax.f32 %v381, %v382
    %v384 = vrot.slane %v313, 4
    %v385 = vmax.f32 %v313, %v384
    %v386 = vrot.slane %v385, 2
    %v387 = vmax.f32 %v385, %v386
    %v388 = vrot.slane %v387, 1
    %v389 = vmax.f32 %v387, %v388
    %v390 = vrot.slane %v314, 4
    %v391 = vmax.f32 %v314, %v390
    %v392 = vrot.slane %v391, 2
    %v393 = vmax.f32 %v391, %v392
    %v394 = vrot.slane %v393, 1
    %v395 = vmax.f32 %v393, %v394
    %v396 = vrot.slane %v315, 4
    %v397 = vmax.f32 %v315, %v396
    %v398 = vrot.slane %v397, 2
    %v399 = vmax.f32 %v397, %v398
    %v400 = vrot.slane %v399, 1
    %v401 = vmax.f32 %v399, %v400
    %v402 = vrot.slane %v316, 4
    %v403 = vmax.f32 %v316, %v402
    %v404 = vrot.slane %v403, 2
    %v405 = vmax.f32 %v403, %v404
    %v406 = vrot.slane %v405, 1
    %v407 = vmax.f32 %v405, %v406
    %v408 = vrot.slane %v317, 4
    %v409 = vmax.f32 %v317, %v408
    %v410 = vrot.slane %v409, 2
    %v411 = vmax.f32 %v409, %v410
    %v412 = vrot.slane %v411, 1
    %v413 = vmax.f32 %v411, %v412
    %v414 = vld [vmem:[%s2] sm:$0xff]
    %v415 = vld [vmem:[%s2 + $0x8] sm:$0xff]
    %v416 = vpack.c.bf16 %v323, %v323
    %v417 = vpack.c.bf16 %v329, %v329
    %v418 = vpack.c.bf16 %v335, %v335
    %v419 = vpack.c.bf16 %v341, %v341
    %v420 = vpack.c.bf16 %v347, %v347
    %v421 = vpack.c.bf16 %v353, %v353
    %v422 = vpack.c.bf16 %v359, %v359
    %v423 = vpack.c.bf16 %v365, %v365
    %v424 = vpack.c.bf16 %v371, %v371
    %v425 = vpack.c.bf16 %v377, %v377
    %v426 = vpack.c.bf16 %v383, %v383
    %v427 = vpack.c.bf16 %v389, %v389
    %v428 = vpack.c.bf16 %v395, %v395
    %v429 = vpack.c.bf16 %v401, %v401
    %v430 = vpack.c.bf16 %v407, %v407
    %v431 = vpack.c.bf16 %v413, %v413
    %v432 = vld [vmem:[#allocation2 + $0x80] sm:$0xff]
    %v433 = vld [vmem:[#allocation2 + $0x88] sm:$0xff]
    %v434 = vld [vmem:[#allocation2 + $0x90] sm:$0xff]
    %v435 = vld [vmem:[#allocation2 + $0x98] sm:$0xff]
    %v436 = vld [vmem:[#allocation2 + $0xa0] sm:$0xff]
    %v437 = vld [vmem:[#allocation2 + $0xa8] sm:$0xff]
    %v438 = vld [vmem:[#allocation2 + $0xb0] sm:$0xff]
    %v439 = vld [vmem:[#allocation2 + $0xb8] sm:$0xff]
    %v440 = vld [vmem:[#allocation2 + $0xc0] sm:$0xff]
    %v441 = vld [vmem:[#allocation2 + $0xc8] sm:$0xff]
    %v442 = vld [vmem:[#allocation2 + $0xd0] sm:$0xff]
    %v443 = vld [vmem:[#allocation2 + $0xd8] sm:$0xff]
    %v444 = vld [vmem:[#allocation2 + $0xe0] sm:$0xff]
    %v445 = vld [vmem:[#allocation2 + $0xe8] sm:$0xff]
    %v446 = vld [vmem:[#allocation2 + $0xf0] sm:$0xff]
    %v447 = vld [vmem:[#allocation2 + $0xf8] sm:$0xff]
    %v448 = vld [vmem:[#allocation2 + $0x100] sm:$0xff]
    %v449 = vld [vmem:[#allocation2 + $0x108] sm:$0xff]
    %v450 = vld [vmem:[#allocation2 + $0x110] sm:$0xff]
    %v451 = vld [vmem:[#allocation2 + $0x118] sm:$0xff]
    %v452 = vld [vmem:[#allocation2 + $0x120] sm:$0xff]
    %v453 = vld [vmem:[#allocation2 + $0x128] sm:$0xff]
    %v454 = vld [vmem:[#allocation2 + $0x130] sm:$0xff]
    %v455 = vld [vmem:[#allocation2 + $0x138] sm:$0xff]
    %v456 = vld [vmem:[#allocation2 + $0x140] sm:$0xff]
    %v457 = vld [vmem:[#allocation2 + $0x148] sm:$0xff]
    %v458 = vld [vmem:[#allocation2 + $0x150] sm:$0xff]
    %v459 = vld [vmem:[#allocation2 + $0x158] sm:$0xff]
    %v460 = vld [vmem:[#allocation2 + $0x160] sm:$0xff]
    %v461 = vld [vmem:[#allocation2 + $0x168] sm:$0xff]
    %v462 = vld [vmem:[#allocation2 + $0x170] sm:$0xff]
    %v463 = vld [vmem:[#allocation2 + $0x178] sm:$0xff]
    %v464 = vlaneseq
    %v465 = vshrl.u32 %v464, 7
    %v466 = vsub.s32 0, %v465
    %v467 = vrot.slane %v414, %v466
    %v468 = vlaneseq
    %v469 = vshrl.u32 %v468, 7
    %v470 = vsub.s32 0, %v469
    %v471 = vrot.slane %v415, %v470
    %v488 = vunpack.c.l.b16 %v416
    %v489 = vunpack.c.l.b16 %v417
    %v490 = vunpack.c.l.b16 %v418
    %v491 = vunpack.c.l.b16 %v419
    %v492 = vunpack.c.l.b16 %v420
    %v493 = vunpack.c.l.b16 %v421
    %v494 = vunpack.c.l.b16 %v422
    %v495 = vunpack.c.l.b16 %v423
    %v496 = vunpack.c.l.b16 %v424
    %v497 = vunpack.c.l.b16 %v425
    %v498 = vunpack.c.l.b16 %v426
    %v499 = vunpack.c.l.b16 %v427
    %v500 = vunpack.c.l.b16 %v428
    %v501 = vunpack.c.l.b16 %v429
    %v502 = vunpack.c.l.b16 %v430
    %v503 = vunpack.c.l.b16 %v431
    %vm504 = vcmask 1041409
    %v505 = vsel %vm504, %v490, %v488
    %vm506 = vcmask 1042434
    %v507 = vsel %vm506, %v492, %v505
    %vm508 = vcmask 1043459
    %v509 = vsel %vm508, %v494, %v507
    %vm510 = vcmask 1044484
    %v511 = vsel %vm510, %v496, %v509
    %vm512 = vcmask 1045509
    %v513 = vsel %vm512, %v498, %v511
    %vm514 = vcmask 1046534
    %v515 = vsel %vm514, %v500, %v513
    %vm516 = vcmask 1047559
    %v517 = vsel %vm516, %v502, %v515
    %v518 = vsel %vm504, %v491, %v489
    %v519 = vsel %vm506, %v493, %v518
    %v520 = vsel %vm508, %v495, %v519
    %v521 = vsel %vm510, %v497, %v520
    %v522 = vsel %vm512, %v499, %v521
    %v523 = vsel %vm514, %v501, %v522
    %v524 = vsel %vm516, %v503, %v523
    %v525 = vpack.c.b16 %v517, %v517
    %v526 = vpack.c.b16 %v524, %v524
    %v561 = vunpack.c.l.b16 %v432
    %v562 = vunpack.c.h.b16 %v432
    %v563 = vunpack.c.l.b16 %v433
    %v564 = vunpack.c.h.b16 %v433
    %v565 = vunpack.c.l.b16 %v434
    %v566 = vunpack.c.h.b16 %v434
    %v567 = vunpack.c.l.b16 %v435
    %v568 = vunpack.c.h.b16 %v435
    %v569 = vunpack.c.l.b16 %v436
    %v570 = vunpack.c.h.b16 %v436
    %v571 = vunpack.c.l.b16 %v437
    %v572 = vunpack.c.h.b16 %v437
    %v573 = vunpack.c.l.b16 %v438
    %v574 = vunpack.c.h.b16 %v438
    %v575 = vunpack.c.l.b16 %v439
    %v576 = vunpack.c.h.b16 %v439
    %v577 = vunpack.c.l.b16 %v440
    %v578 = vunpack.c.h.b16 %v440
    %v579 = vunpack.c.l.b16 %v441
    %v580 = vunpack.c.h.b16 %v441
    %v581 = vunpack.c.l.b16 %v442
    %v582 = vunpack.c.h.b16 %v442
    %v583 = vunpack.c.l.b16 %v443
    %v584 = vunpack.c.h.b16 %v443
    %v585 = vunpack.c.l.b16 %v444
    %v586 = vunpack.c.h.b16 %v444
    %v587 = vunpack.c.l.b16 %v445
    %v588 = vunpack.c.h.b16 %v445
    %v589 = vunpack.c.l.b16 %v446
    %v590 = vunpack.c.h.b16 %v446
    %v591 = vunpack.c.l.b16 %v447
    %v592 = vunpack.c.h.b16 %v447
    %v593 = vunpack.c.l.b16 %v448
    %v594 = vunpack.c.h.b16 %v448
    %v595 = vunpack.c.l.b16 %v449
    %v596 = vunpack.c.h.b16 %v449
    %v597 = vunpack.c.l.b16 %v450
    %v598 = vunpack.c.h.b16 %v450
    %v599 = vunpack.c.l.b16 %v451
    %v600 = vunpack.c.h.b16 %v451
    %v601 = vunpack.c.l.b16 %v452
    %v602 = vunpack.c.h.b16 %v452
    %v603 = vunpack.c.l.b16 %v453
    %v604 = vunpack.c.h.b16 %v453
    %v605 = vunpack.c.l.b16 %v454
    %v606 = vunpack.c.h.b16 %v454
    %v607 = vunpack.c.l.b16 %v455
    %v608 = vunpack.c.h.b16 %v455
    %v609 = vunpack.c.l.b16 %v456
    %v610 = vunpack.c.h.b16 %v456
    %v611 = vunpack.c.l.b16 %v457
    %v612 = vunpack.c.h.b16 %v457
    %v613 = vunpack.c.l.b16 %v458
    %v614 = vunpack.c.h.b16 %v458
    %v615 = vunpack.c.l.b16 %v459
    %v616 = vunpack.c.h.b16 %v459
    %v617 = vunpack.c.l.b16 %v460
    %v618 = vunpack.c.h.b16 %v460
    %v619 = vunpack.c.l.b16 %v461
    %v620 = vunpack.c.h.b16 %v461
    %v621 = vunpack.c.l.b16 %v462
    %v622 = vunpack.c.h.b16 %v462
    %v623 = vunpack.c.l.b16 %v463
    %v624 = vunpack.c.h.b16 %v463
    %v625 = vpack.c.b16 %v563, %v561
    %v626 = vpack.c.b16 %v564, %v562
    %v627 = vpack.c.b16 %v567, %v565
    %v628 = vpack.c.b16 %v568, %v566
    %v629 = vpack.c.b16 %v571, %v569
    %v630 = vpack.c.b16 %v572, %v570
    %v631 = vpack.c.b16 %v575, %v573
    %v632 = vpack.c.b16 %v576, %v574
    %v633 = vpack.c.b16 %v579, %v577
    %v634 = vpack.c.b16 %v580, %v578
    %v635 = vpack.c.b16 %v583, %v581
    %v636 = vpack.c.b16 %v584, %v582
    %v637 = vpack.c.b16 %v587, %v585
    %v638 = vpack.c.b16 %v588, %v586
    %v639 = vpack.c.b16 %v591, %v589
    %v640 = vpack.c.b16 %v592, %v590
    %v641 = vpack.c.b16 %v595, %v593
    %v642 = vpack.c.b16 %v596, %v594
    %v643 = vpack.c.b16 %v599, %v597
    %v644 = vpack.c.b16 %v600, %v598
    %v645 = vpack.c.b16 %v603, %v601
    %v646 = vpack.c.b16 %v604, %v602
    %v647 = vpack.c.b16 %v607, %v605
    %v648 = vpack.c.b16 %v608, %v606
    %v649 = vpack.c.b16 %v611, %v609
    %v650 = vpack.c.b16 %v612, %v610
    %v651 = vpack.c.b16 %v615, %v613
    %v652 = vpack.c.b16 %v616, %v614
    %v653 = vpack.c.b16 %v619, %v617
    %v654 = vpack.c.b16 %v620, %v618
    %v655 = vpack.c.b16 %v623, %v621
    %v656 = vpack.c.b16 %v624, %v622
    %689 = vmatprep.subr.bf16.mxu0 %v626
    %690 = vmatpush1.bf16.msra.mxu0 %v625
    %691 = vmatprep.subr.bf16.mxu0 %v628
    %692 = vmatpush1.bf16.msra.mxu0 %v627
    %693 = vmatprep.subr.bf16.mxu0 %v630
    %694 = vmatpush1.bf16.msra.mxu0 %v629
    %695 = vmatprep.subr.bf16.mxu0 %v632
    %696 = vmatpush1.bf16.msra.mxu0 %v631
    %697 = vmatprep.subr.bf16.mxu0 %v634
    %698 = vmatpush1.bf16.msra.mxu0 %v633
    %699 = vmatprep.subr.bf16.mxu0 %v636
    %700 = vmatpush1.bf16.msra.mxu0 %v635
    %701 = vmatprep.subr.bf16.mxu0 %v638
    %702 = vmatpush1.bf16.msra.mxu0 %v637
    %703 = vmatprep.subr.bf16.mxu0 %v640
    %704 = vmatpush1.bf16.msra.mxu0 %v639
    %705 = vmatprep.subr.bf16.mxu0 %v642
    %706 = vmatpush1.bf16.msra.mxu0 %v641
    %707 = vmatprep.subr.bf16.mxu0 %v644
    %708 = vmatpush1.bf16.msra.mxu0 %v643
    %709 = vmatprep.subr.bf16.mxu0 %v646
    %710 = vmatpush1.bf16.msra.mxu0 %v645
    %711 = vmatprep.subr.bf16.mxu0 %v648
    %712 = vmatpush1.bf16.msra.mxu0 %v647
    %713 = vmatprep.subr.bf16.mxu0 %v650
    %714 = vmatpush1.bf16.msra.mxu0 %v649
    %715 = vmatprep.subr.bf16.mxu0 %v652
    %716 = vmatpush1.bf16.msra.mxu0 %v651
    %717 = vmatprep.subr.bf16.mxu0 %v654
    %718 = vmatpush1.bf16.msra.mxu0 %v653
    %719 = vmatprep.subr.bf16.mxu0 %v656
    %720 = vmatpush1.bf16.msra.mxu0 %v655
    %721 = vmatprep.mubr.bf16.mxu0 %v526
    %722 = vmatmul.mubr.bf16.gmra.mrb[0].mxu0 %v525
    %v723 = vpop.f32.mrb[0].mxu0
    %v724 = vadd.f32 %v467, %v723
    %v725 = vpop.f32.mrb[0].mxu0
    %v726 = vadd.f32 %v471, %v725
    %v727 = vpop.f32.mrb[0].mxu0
    %v728 = vpop.f32.mrb[0].mxu0
    %729 = vdwg.mxu0
    %v730 = vmax.f32 %v724, 0.0
    %v731 = vmax.f32 %v726, 0.0
    %v732 = vpack.c.bf16 %v730, %v730
    %v733 = vpack.c.bf16 %v731, %v731
    %v734 = vld [vmem:[#allocation2 + $0x180] sm:$0xff]
    %v735 = vld [vmem:[#allocation2 + $0x188] sm:$0xff]
    %v736 = vld [vmem:[#allocation2 + $0x190] sm:$0xff]
    %v737 = vld [vmem:[#allocation2 + $0x198] sm:$0xff]
    %v738 = vld [vmem:[#allocation2 + $0x1a0] sm:$0xff]
    %v739 = vld [vmem:[#allocation2 + $0x1a8] sm:$0xff]
    %v740 = vld [vmem:[#allocation2 + $0x1b0] sm:$0xff]
    %v741 = vld [vmem:[#allocation2 + $0x1b8] sm:$0xff]
    %v742 = vld [vmem:[#allocation2 + $0x1c0] sm:$0xff]
    %v743 = vld [vmem:[#allocation2 + $0x1c8] sm:$0xff]
    %v744 = vld [vmem:[#allocation2 + $0x1d0] sm:$0xff]
    %v745 = vld [vmem:[#allocation2 + $0x1d8] sm:$0xff]
    %v746 = vld [vmem:[#allocation2 + $0x1e0] sm:$0xff]
    %v747 = vld [vmem:[#allocation2 + $0x1e8] sm:$0xff]
    %v748 = vld [vmem:[#allocation2 + $0x1f0] sm:$0xff]
    %v749 = vld [vmem:[#allocation2 + $0x1f8] sm:$0xff]
    %v750 = vld [vmem:[#allocation2 + $0x200] sm:$0xff]
    %v751 = vld [vmem:[#allocation2 + $0x208] sm:$0xff]
    %v752 = vld [vmem:[#allocation2 + $0x210] sm:$0xff]
    %v753 = vld [vmem:[#allocation2 + $0x218] sm:$0xff]
    %v754 = vld [vmem:[#allocation2 + $0x220] sm:$0xff]
    %v755 = vld [vmem:[#allocation2 + $0x228] sm:$0xff]
    %v756 = vld [vmem:[#allocation2 + $0x230] sm:$0xff]
    %v757 = vld [vmem:[#allocation2 + $0x238] sm:$0xff]
    %v758 = vld [vmem:[#allocation2 + $0x240] sm:$0xff]
    %v759 = vld [vmem:[#allocation2 + $0x248] sm:$0xff]
    %v760 = vld [vmem:[#allocation2 + $0x250] sm:$0xff]
    %v761 = vld [vmem:[#allocation2 + $0x258] sm:$0xff]
    %v762 = vld [vmem:[#allocation2 + $0x260] sm:$0xff]
    %v763 = vld [vmem:[#allocation2 + $0x268] sm:$0xff]
    %v764 = vld [vmem:[#allocation2 + $0x270] sm:$0xff]
    %v765 = vld [vmem:[#allocation2 + $0x278] sm:$0xff]
    %v766 = vlaneseq
    %v767 = vshrl.u32 %v766, 7
    %v768 = vsub.s32 1, %v767
    %v769 = vrot.slane %v414, %v768
    %v770 = vlaneseq
    %v771 = vshrl.u32 %v770, 7
    %v772 = vsub.s32 1, %v771
    %v773 = vrot.slane %v415, %v772
    %v806 = vunpack.c.l.b16 %v734
    %v807 = vunpack.c.h.b16 %v734
    %v808 = vunpack.c.l.b16 %v735
    %v809 = vunpack.c.h.b16 %v735
    %v810 = vunpack.c.l.b16 %v736
    %v811 = vunpack.c.h.b16 %v736
    %v812 = vunpack.c.l.b16 %v737
    %v813 = vunpack.c.h.b16 %v737
    %v814 = vunpack.c.l.b16 %v738
    %v815 = vunpack.c.h.b16 %v738
    %v816 = vunpack.c.l.b16 %v739
    %v817 = vunpack.c.h.b16 %v739
    %v818 = vunpack.c.l.b16 %v740
    %v819 = vunpack.c.h.b16 %v740
    %v820 = vunpack.c.l.b16 %v741
    %v821 = vunpack.c.h.b16 %v741
    %v822 = vunpack.c.l.b16 %v742
    %v823 = vunpack.c.h.b16 %v742
    %v824 = vunpack.c.l.b16 %v743
    %v825 = vunpack.c.h.b16 %v743
    %v826 = vunpack.c.l.b16 %v744
    %v827 = vunpack.c.h.b16 %v744
    %v828 = vunpack.c.l.b16 %v745
    %v829 = vunpack.c.h.b16 %v745
    %v830 = vunpack.c.l.b16 %v746
    %v831 = vunpack.c.h.b16 %v746
    %v832 = vunpack.c.l.b16 %v747
    %v833 = vunpack.c.h.b16 %v747
    %v834 = vunpack.c.l.b16 %v748
    %v835 = vunpack.c.h.b16 %v748
    %v836 = vunpack.c.l.b16 %v749
    %v837 = vunpack.c.h.b16 %v749
    %v838 = vunpack.c.l.b16 %v750
    %v839 = vunpack.c.h.b16 %v750
    %v840 = vunpack.c.l.b16 %v751
    %v841 = vunpack.c.h.b16 %v751
    %v842 = vunpack.c.l.b16 %v752
    %v843 = vunpack.c.h.b16 %v752
    %v844 = vunpack.c.l.b16 %v753
    %v845 = vunpack.c.h.b16 %v753
    %v846 = vunpack.c.l.b16 %v754
    %v847 = vunpack.c.h.b16 %v754
    %v848 = vunpack.c.l.b16 %v755
    %v849 = vunpack.c.h.b16 %v755
    %v850 = vunpack.c.l.b16 %v756
    %v851 = vunpack.c.h.b16 %v756
    %v852 = vunpack.c.l.b16 %v757
    %v853 = vunpack.c.h.b16 %v757
    %v854 = vunpack.c.l.b16 %v758
    %v855 = vunpack.c.h.b16 %v758
    %v856 = vunpack.c.l.b16 %v759
    %v857 = vunpack.c.h.b16 %v759
    %v858 = vunpack.c.l.b16 %v760
    %v859 = vunpack.c.h.b16 %v760
    %v860 = vunpack.c.l.b16 %v761
    %v861 = vunpack.c.h.b16 %v761
    %v862 = vunpack.c.l.b16 %v762
    %v863 = vunpack.c.h.b16 %v762
    %v864 = vunpack.c.l.b16 %v763
    %v865 = vunpack.c.h.b16 %v763
    %v866 = vunpack.c.l.b16 %v764
    %v867 = vunpack.c.h.b16 %v764
    %v868 = vunpack.c.l.b16 %v765
    %v869 = vunpack.c.h.b16 %v765
    %v870 = vpack.c.b16 %v808, %v806
    %v871 = vpack.c.b16 %v809, %v807
    %v872 = vpack.c.b16 %v812, %v810
    %v873 = vpack.c.b16 %v813, %v811
    %v874 = vpack.c.b16 %v816, %v814
    %v875 = vpack.c.b16 %v817, %v815
    %v876 = vpack.c.b16 %v820, %v818
    %v877 = vpack.c.b16 %v821, %v819
    %v878 = vpack.c.b16 %v824, %v822
    %v879 = vpack.c.b16 %v825, %v823
    %v880 = vpack.c.b16 %v828, %v826
    %v881 = vpack.c.b16 %v829, %v827
    %v882 = vpack.c.b16 %v832, %v830
    %v883 = vpack.c.b16 %v833, %v831
    %v884 = vpack.c.b16 %v836, %v834
    %v885 = vpack.c.b16 %v837, %v835
    %v886 = vpack.c.b16 %v840, %v838
    %v887 = vpack.c.b16 %v841, %v839
    %v888 = vpack.c.b16 %v844, %v842
    %v889 = vpack.c.b16 %v845, %v843
    %v890 = vpack.c.b16 %v848, %v846
    %v891 = vpack.c.b16 %v849, %v847
    %v892 = vpack.c.b16 %v852, %v850
    %v893 = vpack.c.b16 %v853, %v851
    %v894 = vpack.c.b16 %v856, %v854
    %v895 = vpack.c.b16 %v857, %v855
    %v896 = vpack.c.b16 %v860, %v858
    %v897 = vpack.c.b16 %v861, %v859
    %v898 = vpack.c.b16 %v864, %v862
    %v899 = vpack.c.b16 %v865, %v863
    %v900 = vpack.c.b16 %v868, %v866
    %v901 = vpack.c.b16 %v869, %v867
    %934 = vmatprep.subr.bf16.mxu0 %v871
    %935 = vmatpush1.bf16.msra.mxu0 %v870
    %936 = vmatprep.subr.bf16.mxu0 %v873
    %937 = vmatpush1.bf16.msra.mxu0 %v872
    %938 = vmatprep.subr.bf16.mxu0 %v875
    %939 = vmatpush1.bf16.msra.mxu0 %v874
    %940 = vmatprep.subr.bf16.mxu0 %v877
    %941 = vmatpush1.bf16.msra.mxu0 %v876
    %942 = vmatprep.subr.bf16.mxu0 %v879
    %943 = vmatpush1.bf16.msra.mxu0 %v878
    %944 = vmatprep.subr.bf16.mxu0 %v881
    %945 = vmatpush1.bf16.msra.mxu0 %v880
    %946 = vmatprep.subr.bf16.mxu0 %v883
    %947 = vmatpush1.bf16.msra.mxu0 %v882
    %948 = vmatprep.subr.bf16.mxu0 %v885
    %949 = vmatpush1.bf16.msra.mxu0 %v884
    %950 = vmatprep.subr.bf16.mxu0 %v887
    %951 = vmatpush1.bf16.msra.mxu0 %v886
    %952 = vmatprep.subr.bf16.mxu0 %v889
    %953 = vmatpush1.bf16.msra.mxu0 %v888
    %954 = vmatprep.subr.bf16.mxu0 %v891
    %955 = vmatpush1.bf16.msra.mxu0 %v890
    %956 = vmatprep.subr.bf16.mxu0 %v893
    %957 = vmatpush1.bf16.msra.mxu0 %v892
    %958 = vmatprep.subr.bf16.mxu0 %v895
    %959 = vmatpush1.bf16.msra.mxu0 %v894
    %960 = vmatprep.subr.bf16.mxu0 %v897
    %961 = vmatpush1.bf16.msra.mxu0 %v896
    %962 = vmatprep.subr.bf16.mxu0 %v899
    %963 = vmatpush1.bf16.msra.mxu0 %v898
    %964 = vmatprep.subr.bf16.mxu0 %v901
    %965 = vmatpush1.bf16.msra.mxu0 %v900
    %966 = vmatprep.mubr.bf16.mxu0 %v733
    %967 = vmatmul.mubr.bf16.gmra.mrb[0].mxu0 %v732
    %v968 = vpop.f32.mrb[0].mxu0
    %v969 = vadd.f32 %v769, %v968
    %v970 = vpop.f32.mrb[0].mxu0
    %v971 = vadd.f32 %v773, %v970
    %v972 = vpop.f32.mrb[0].mxu0
    %v973 = vpop.f32.mrb[0].mxu0
    %974 = vdwg.mxu0
    %v975 = vmax.f32 %v969, 0.0
    %v976 = vmax.f32 %v971, 0.0
    %v977 = vpack.c.bf16 %v975, %v975
    %v978 = vpack.c.bf16 %v976, %v976
    %v979 = vld [vmem:[#allocation2 + $0x280] sm:$0xff]
    %v980 = vld [vmem:[#allocation2 + $0x288] sm:$0xff]
    %v981 = vld [vmem:[#allocation2 + $0x290] sm:$0xff]
    %v982 = vld [vmem:[#allocation2 + $0x298] sm:$0xff]
    %v983 = vld [vmem:[#allocation2 + $0x2a0] sm:$0xff]
    %v984 = vld [vmem:[#allocation2 + $0x2a8] sm:$0xff]
    %v985 = vld [vmem:[#allocation2 + $0x2b0] sm:$0xff]
    %v986 = vld [vmem:[#allocation2 + $0x2b8] sm:$0xff]
    %v987 = vld [vmem:[#allocation2 + $0x2c0] sm:$0xff]
    %v988 = vld [vmem:[#allocation2 + $0x2c8] sm:$0xff]
    %v989 = vld [vmem:[#allocation2 + $0x2d0] sm:$0xff]
    %v990 = vld [vmem:[#allocation2 + $0x2d8] sm:$0xff]
    %v991 = vld [vmem:[#allocation2 + $0x2e0] sm:$0xff]
    %v992 = vld [vmem:[#allocation2 + $0x2e8] sm:$0xff]
    %v993 = vld [vmem:[#allocation2 + $0x2f0] sm:$0xff]
    %v994 = vld [vmem:[#allocation2 + $0x2f8] sm:$0xff]
    %v995 = vld [vmem:[#allocation2 + $0x300] sm:$0xff]
    %v996 = vld [vmem:[#allocation2 + $0x308] sm:$0xff]
    %v997 = vld [vmem:[#allocation2 + $0x310] sm:$0xff]
    %v998 = vld [vmem:[#allocation2 + $0x318] sm:$0xff]
    %v999 = vld [vmem:[#allocation2 + $0x320] sm:$0xff]
    %v1000 = vld [vmem:[#allocation2 + $0x328] sm:$0xff]
    %v1001 = vld [vmem:[#allocation2 + $0x330] sm:$0xff]
    %v1002 = vld [vmem:[#allocation2 + $0x338] sm:$0xff]
    %v1003 = vld [vmem:[#allocation2 + $0x340] sm:$0xff]
    %v1004 = vld [vmem:[#allocation2 + $0x348] sm:$0xff]
    %v1005 = vld [vmem:[#allocation2 + $0x350] sm:$0xff]
    %v1006 = vld [vmem:[#allocation2 + $0x358] sm:$0xff]
    %v1007 = vld [vmem:[#allocation2 + $0x360] sm:$0xff]
    %v1008 = vld [vmem:[#allocation2 + $0x368] sm:$0xff]
    %v1009 = vld [vmem:[#allocation2 + $0x370] sm:$0xff]
    %v1010 = vld [vmem:[#allocation2 + $0x378] sm:$0xff]
    %v1011 = vlaneseq
    %v1012 = vshrl.u32 %v1011, 7
    %v1013 = vsub.s32 2, %v1012
    %v1014 = vrot.slane %v414, %v1013
    %v1015 = vlaneseq
    %v1016 = vshrl.u32 %v1015, 7
    %v1017 = vsub.s32 2, %v1016
    %v1018 = vrot.slane %v415, %v1017
    %v1051 = vunpack.c.l.b16 %v979
    %v1052 = vunpack.c.h.b16 %v979
    %v1053 = vunpack.c.l.b16 %v980
    %v1054 = vunpack.c.h.b16 %v980
    %v1055 = vunpack.c.l.b16 %v981
    %v1056 = vunpack.c.h.b16 %v981
    %v1057 = vunpack.c.l.b16 %v982
    %v1058 = vunpack.c.h.b16 %v982
    %v1059 = vunpack.c.l.b16 %v983
    %v1060 = vunpack.c.h.b16 %v983
    %v1061 = vunpack.c.l.b16 %v984
    %v1062 = vunpack.c.h.b16 %v984
    %v1063 = vunpack.c.l.b16 %v985
    %v1064 = vunpack.c.h.b16 %v985
    %v1065 = vunpack.c.l.b16 %v986
    %v1066 = vunpack.c.h.b16 %v986
    %v1067 = vunpack.c.l.b16 %v987
    %v1068 = vunpack.c.h.b16 %v987
    %v1069 = vunpack.c.l.b16 %v988
    %v1070 = vunpack.c.h.b16 %v988
    %v1071 = vunpack.c.l.b16 %v989
    %v1072 = vunpack.c.h.b16 %v989
    %v1073 = vunpack.c.l.b16 %v990
    %v1074 = vunpack.c.h.b16 %v990
    %v1075 = vunpack.c.l.b16 %v991
    %v1076 = vunpack.c.h.b16 %v991
    %v1077 = vunpack.c.l.b16 %v992
    %v1078 = vunpack.c.h.b16 %v992
    %v1079 = vunpack.c.l.b16 %v993
    %v1080 = vunpack.c.h.b16 %v993
    %v1081 = vunpack.c.l.b16 %v994
    %v1082 = vunpack.c.h.b16 %v994
    %v1083 = vunpack.c.l.b16 %v995
    %v1084 = vunpack.c.h.b16 %v995
    %v1085 = vunpack.c.l.b16 %v996
    %v1086 = vunpack.c.h.b16 %v996
    %v1087 = vunpack.c.l.b16 %v997
    %v1088 = vunpack.c.h.b16 %v997
    %v1089 = vunpack.c.l.b16 %v998
    %v1090 = vunpack.c.h.b16 %v998
    %v1091 = vunpack.c.l.b16 %v999
    %v1092 = vunpack.c.h.b16 %v999
    %v1093 = vunpack.c.l.b16 %v1000
    %v1094 = vunpack.c.h.b16 %v1000
    %v1095 = vunpack.c.l.b16 %v1001
    %v1096 = vunpack.c.h.b16 %v1001
    %v1097 = vunpack.c.l.b16 %v1002
    %v1098 = vunpack.c.h.b16 %v1002
    %v1099 = vunpack.c.l.b16 %v1003
    %v1100 = vunpack.c.h.b16 %v1003
    %v1101 = vunpack.c.l.b16 %v1004
    %v1102 = vunpack.c.h.b16 %v1004
    %v1103 = vunpack.c.l.b16 %v1005
    %v1104 = vunpack.c.h.b16 %v1005
    %v1105 = vunpack.c.l.b16 %v1006
    %v1106 = vunpack.c.h.b16 %v1006
    %v1107 = vunpack.c.l.b16 %v1007
    %v1108 = vunpack.c.h.b16 %v1007
    %v1109 = vunpack.c.l.b16 %v1008
    %v1110 = vunpack.c.h.b16 %v1008
    %v1111 = vunpack.c.l.b16 %v1009
    %v1112 = vunpack.c.h.b16 %v1009
    %v1113 = vunpack.c.l.b16 %v1010
    %v1114 = vunpack.c.h.b16 %v1010
    %v1115 = vpack.c.b16 %v1053, %v1051
    %v1116 = vpack.c.b16 %v1054, %v1052
    %v1117 = vpack.c.b16 %v1057, %v1055
    %v1118 = vpack.c.b16 %v1058, %v1056
    %v1119 = vpack.c.b16 %v1061, %v1059
    %v1120 = vpack.c.b16 %v1062, %v1060
    %v1121 = vpack.c.b16 %v1065, %v1063
    %v1122 = vpack.c.b16 %v1066, %v1064
    %v1123 = vpack.c.b16 %v1069, %v1067
    %v1124 = vpack.c.b16 %v1070, %v1068
    %v1125 = vpack.c.b16 %v1073, %v1071
    %v1126 = vpack.c.b16 %v1074, %v1072
    %v1127 = vpack.c.b16 %v1077, %v1075
    %v1128 = vpack.c.b16 %v1078, %v1076
    %v1129 = vpack.c.b16 %v1081, %v1079
    %v1130 = vpack.c.b16 %v1082, %v1080
    %v1131 = vpack.c.b16 %v1085, %v1083
    %v1132 = vpack.c.b16 %v1086, %v1084
    %v1133 = vpack.c.b16 %v1089, %v1087
    %v1134 = vpack.c.b16 %v1090, %v1088
    %v1135 = vpack.c.b16 %v1093, %v1091
    %v1136 = vpack.c.b16 %v1094, %v1092
    %v1137 = vpack.c.b16 %v1097, %v1095
    %v1138 = vpack.c.b16 %v1098, %v1096
    %v1139 = vpack.c.b16 %v1101, %v1099
    %v1140 = vpack.c.b16 %v1102, %v1100
    %v1141 = vpack.c.b16 %v1105, %v1103
    %v1142 = vpack.c.b16 %v1106, %v1104
    %v1143 = vpack.c.b16 %v1109, %v1107
    %v1144 = vpack.c.b16 %v1110, %v1108
    %v1145 = vpack.c.b16 %v1113, %v1111
    %v1146 = vpack.c.b16 %v1114, %v1112
    %1179 = vmatprep.subr.bf16.mxu0 %v1116
    %1180 = vmatpush1.bf16.msra.mxu0 %v1115
    %1181 = vmatprep.subr.bf16.mxu0 %v1118
    %1182 = vmatpush1.bf16.msra.mxu0 %v1117
    %1183 = vmatprep.subr.bf16.mxu0 %v1120
    %1184 = vmatpush1.bf16.msra.mxu0 %v1119
    %1185 = vmatprep.subr.bf16.mxu0 %v1122
    %1186 = vmatpush1.bf16.msra.mxu0 %v1121
    %1187 = vmatprep.subr.bf16.mxu0 %v1124
    %1188 = vmatpush1.bf16.msra.mxu0 %v1123
    %1189 = vmatprep.subr.bf16.mxu0 %v1126
    %1190 = vmatpush1.bf16.msra.mxu0 %v1125
    %1191 = vmatprep.subr.bf16.mxu0 %v1128
    %1192 = vmatpush1.bf16.msra.mxu0 %v1127
    %1193 = vmatprep.subr.bf16.mxu0 %v1130
    %1194 = vmatpush1.bf16.msra.mxu0 %v1129
    %1195 = vmatprep.subr.bf16.mxu0 %v1132
    %1196 = vmatpush1.bf16.msra.mxu0 %v1131
    %1197 = vmatprep.subr.bf16.mxu0 %v1134
    %1198 = vmatpush1.bf16.msra.mxu0 %v1133
    %1199 = vmatprep.subr.bf16.mxu0 %v1136
    %1200 = vmatpush1.bf16.msra.mxu0 %v1135
    %1201 = vmatprep.subr.bf16.mxu0 %v1138
    %1202 = vmatpush1.bf16.msra.mxu0 %v1137
    %1203 = vmatprep.subr.bf16.mxu0 %v1140
    %1204 = vmatpush1.bf16.msra.mxu0 %v1139
    %1205 = vmatprep.subr.bf16.mxu0 %v1142
    %1206 = vmatpush1.bf16.msra.mxu0 %v1141
    %1207 = vmatprep.subr.bf16.mxu0 %v1144
    %1208 = vmatpush1.bf16.msra.mxu0 %v1143
    %1209 = vmatprep.subr.bf16.mxu0 %v1146
    %1210 = vmatpush1.bf16.msra.mxu0 %v1145
    %1211 = vmatprep.mubr.bf16.mxu0 %v978
    %1212 = vmatmul.mubr.bf16.gmra.mrb[0].mxu0 %v977
    %v1213 = vpop.f32.mrb[0].mxu0
    %v1214 = vadd.f32 %v1014, %v1213
    %v1215 = vpop.f32.mrb[0].mxu0
    %v1216 = vadd.f32 %v1018, %v1215
    %v1217 = vpop.f32.mrb[0].mxu0
    %v1218 = vpop.f32.mrb[0].mxu0
    %1219 = vdwg.mxu0
    %v1220 = vmax.f32 %v1214, 0.0
    %v1221 = vmax.f32 %v1216, 0.0
    %v1222 = vpack.c.bf16 %v1220, %v1220
    %v1223 = vpack.c.bf16 %v1221, %v1221
    %v1224 = vld [vmem:[#allocation2 + $0x380] sm:$0xff]
    %v1225 = vld [vmem:[#allocation2 + $0x388] sm:$0xff]
    %v1226 = vld [vmem:[#allocation2 + $0x390] sm:$0xff]
    %v1227 = vld [vmem:[#allocation2 + $0x398] sm:$0xff]
    %v1228 = vld [vmem:[#allocation2 + $0x3a0] sm:$0xff]
    %v1229 = vld [vmem:[#allocation2 + $0x3a8] sm:$0xff]
    %v1230 = vld [vmem:[#allocation2 + $0x3b0] sm:$0xff]
    %v1231 = vld [vmem:[#allocation2 + $0x3b8] sm:$0xff]
    %v1232 = vld [vmem:[#allocation2 + $0x3c0] sm:$0xff]
    %v1233 = vld [vmem:[#allocation2 + $0x3c8] sm:$0xff]
    %v1234 = vld [vmem:[#allocation2 + $0x3d0] sm:$0xff]
    %v1235 = vld [vmem:[#allocation2 + $0x3d8] sm:$0xff]
    %v1236 = vld [vmem:[#allocation2 + $0x3e0] sm:$0xff]
    %v1237 = vld [vmem:[#allocation2 + $0x3e8] sm:$0xff]
    %v1238 = vld [vmem:[#allocation2 + $0x3f0] sm:$0xff]
    %v1239 = vld [vmem:[#allocation2 + $0x3f8] sm:$0xff]
    %v1240 = vld [vmem:[#allocation2 + $0x400] sm:$0xff]
    %v1241 = vld [vmem:[#allocation2 + $0x408] sm:$0xff]
    %v1242 = vld [vmem:[#allocation2 + $0x410] sm:$0xff]
    %v1243 = vld [vmem:[#allocation2 + $0x418] sm:$0xff]
    %v1244 = vld [vmem:[#allocation2 + $0x420] sm:$0xff]
    %v1245 = vld [vmem:[#allocation2 + $0x428] sm:$0xff]
    %v1246 = vld [vmem:[#allocation2 + $0x430] sm:$0xff]
    %v1247 = vld [vmem:[#allocation2 + $0x438] sm:$0xff]
    %v1248 = vld [vmem:[#allocation2 + $0x440] sm:$0xff]
    %v1249 = vld [vmem:[#allocation2 + $0x448] sm:$0xff]
    %v1250 = vld [vmem:[#allocation2 + $0x450] sm:$0xff]
    %v1251 = vld [vmem:[#allocation2 + $0x458] sm:$0xff]
    %v1252 = vld [vmem:[#allocation2 + $0x460] sm:$0xff]
    %v1253 = vld [vmem:[#allocation2 + $0x468] sm:$0xff]
    %v1254 = vld [vmem:[#allocation2 + $0x470] sm:$0xff]
    %v1255 = vld [vmem:[#allocation2 + $0x478] sm:$0xff]
    %v1256 = vlaneseq
    %v1257 = vshrl.u32 %v1256, 7
    %v1258 = vsub.s32 3, %v1257
    %v1259 = vrot.slane %v414, %v1258
    %v1260 = vlaneseq
    %v1261 = vshrl.u32 %v1260, 7
    %v1262 = vsub.s32 3, %v1261
    %v1263 = vrot.slane %v415, %v1262
    %v1296 = vunpack.c.l.b16 %v1224
    %v1297 = vunpack.c.h.b16 %v1224
    %v1298 = vunpack.c.l.b16 %v1225
    %v1299 = vunpack.c.h.b16 %v1225
    %v1300 = vunpack.c.l.b16 %v1226
    %v1301 = vunpack.c.h.b16 %v1226
    %v1302 = vunpack.c.l.b16 %v1227
    %v1303 = vunpack.c.h.b16 %v1227
    %v1304 = vunpack.c.l.b16 %v1228
    %v1305 = vunpack.c.h.b16 %v1228
    %v1306 = vunpack.c.l.b16 %v1229
    %v1307 = vunpack.c.h.b16 %v1229
    %v1308 = vunpack.c.l.b16 %v1230
    %v1309 = vunpack.c.h.b16 %v1230
    %v1310 = vunpack.c.l.b16 %v1231
    %v1311 = vunpack.c.h.b16 %v1231
    %v1312 = vunpack.c.l.b16 %v1232
    %v1313 = vunpack.c.h.b16 %v1232
    %v1314 = vunpack.c.l.b16 %v1233
    %v1315 = vunpack.c.h.b16 %v1233
    %v1316 = vunpack.c.l.b16 %v1234
    %v1317 = vunpack.c.h.b16 %v1234
    %v1318 = vunpack.c.l.b16 %v1235
    %v1319 = vunpack.c.h.b16 %v1235
    %v1320 = vunpack.c.l.b16 %v1236
    %v1321 = vunpack.c.h.b16 %v1236
    %v1322 = vunpack.c.l.b16 %v1237
    %v1323 = vunpack.c.h.b16 %v1237
    %v1324 = vunpack.c.l.b16 %v1238
    %v1325 = vunpack.c.h.b16 %v1238
    %v1326 = vunpack.c.l.b16 %v1239
    %v1327 = vunpack.c.h.b16 %v1239
    %v1328 = vunpack.c.l.b16 %v1240
    %v1329 = vunpack.c.h.b16 %v1240
    %v1330 = vunpack.c.l.b16 %v1241
    %v1331 = vunpack.c.h.b16 %v1241
    %v1332 = vunpack.c.l.b16 %v1242
    %v1333 = vunpack.c.h.b16 %v1242
    %v1334 = vunpack.c.l.b16 %v1243
    %v1335 = vunpack.c.h.b16 %v1243
    %v1336 = vunpack.c.l.b16 %v1244
    %v1337 = vunpack.c.h.b16 %v1244
    %v1338 = vunpack.c.l.b16 %v1245
    %v1339 = vunpack.c.h.b16 %v1245
    %v1340 = vunpack.c.l.b16 %v1246
    %v1341 = vunpack.c.h.b16 %v1246
    %v1342 = vunpack.c.l.b16 %v1247
    %v1343 = vunpack.c.h.b16 %v1247
    %v1344 = vunpack.c.l.b16 %v1248
    %v1345 = vunpack.c.h.b16 %v1248
    %v1346 = vunpack.c.l.b16 %v1249
    %v1347 = vunpack.c.h.b16 %v1249
    %v1348 = vunpack.c.l.b16 %v1250
    %v1349 = vunpack.c.h.b16 %v1250
    %v1350 = vunpack.c.l.b16 %v1251
    %v1351 = vunpack.c.h.b16 %v1251
    %v1352 = vunpack.c.l.b16 %v1252
    %v1353 = vunpack.c.h.b16 %v1252
    %v1354 = vunpack.c.l.b16 %v1253
    %v1355 = vunpack.c.h.b16 %v1253
    %v1356 = vunpack.c.l.b16 %v1254
    %v1357 = vunpack.c.h.b16 %v1254
    %v1358 = vunpack.c.l.b16 %v1255
    %v1359 = vunpack.c.h.b16 %v1255
    %v1360 = vpack.c.b16 %v1298, %v1296
    %v1361 = vpack.c.b16 %v1299, %v1297
    %v1362 = vpack.c.b16 %v1302, %v1300
    %v1363 = vpack.c.b16 %v1303, %v1301
    %v1364 = vpack.c.b16 %v1306, %v1304
    %v1365 = vpack.c.b16 %v1307, %v1305
    %v1366 = vpack.c.b16 %v1310, %v1308
    %v1367 = vpack.c.b16 %v1311, %v1309
    %v1368 = vpack.c.b16 %v1314, %v1312
    %v1369 = vpack.c.b16 %v1315, %v1313
    %v1370 = vpack.c.b16 %v1318, %v1316
    %v1371 = vpack.c.b16 %v1319, %v1317
    %v1372 = vpack.c.b16 %v1322, %v1320
    %v1373 = vpack.c.b16 %v1323, %v1321
    %v1374 = vpack.c.b16 %v1326, %v1324
    %v1375 = vpack.c.b16 %v1327, %v1325
    %v1376 = vpack.c.b16 %v1330, %v1328
    %v1377 = vpack.c.b16 %v1331, %v1329
    %v1378 = vpack.c.b16 %v1334, %v1332
    %v1379 = vpack.c.b16 %v1335, %v1333
    %v1380 = vpack.c.b16 %v1338, %v1336
    %v1381 = vpack.c.b16 %v1339, %v1337
    %v1382 = vpack.c.b16 %v1342, %v1340
    %v1383 = vpack.c.b16 %v1343, %v1341
    %v1384 = vpack.c.b16 %v1346, %v1344
    %v1385 = vpack.c.b16 %v1347, %v1345
    %v1386 = vpack.c.b16 %v1350, %v1348
    %v1387 = vpack.c.b16 %v1351, %v1349
    %v1388 = vpack.c.b16 %v1354, %v1352
    %v1389 = vpack.c.b16 %v1355, %v1353
    %v1390 = vpack.c.b16 %v1358, %v1356
    %v1391 = vpack.c.b16 %v1359, %v1357
    %1424 = vmatprep.subr.bf16.mxu0 %v1361
    %1425 = vmatpush1.bf16.msra.mxu0 %v1360
    %1426 = vmatprep.subr.bf16.mxu0 %v1363
    %1427 = vmatpush1.bf16.msra.mxu0 %v1362
    %1428 = vmatprep.subr.bf16.mxu0 %v1365
    %1429 = vmatpush1.bf16.msra.mxu0 %v1364
    %1430 = vmatprep.subr.bf16.mxu0 %v1367
    %1431 = vmatpush1.bf16.msra.mxu0 %v1366
    %1432 = vmatprep.subr.bf16.mxu0 %v1369
    %1433 = vmatpush1.bf16.msra.mxu0 %v1368
    %1434 = vmatprep.subr.bf16.mxu0 %v1371
    %1435 = vmatpush1.bf16.msra.mxu0 %v1370
    %1436 = vmatprep.subr.bf16.mxu0 %v1373
    %1437 = vmatpush1.bf16.msra.mxu0 %v1372
    %1438 = vmatprep.subr.bf16.mxu0 %v1375
    %1439 = vmatpush1.bf16.msra.mxu0 %v1374
    %1440 = vmatprep.subr.bf16.mxu0 %v1377
    %1441 = vmatpush1.bf16.msra.mxu0 %v1376
    %1442 = vmatprep.subr.bf16.mxu0 %v1379
    %1443 = vmatpush1.bf16.msra.mxu0 %v1378
    %1444 = vmatprep.subr.bf16.mxu0 %v1381
    %1445 = vmatpush1.bf16.msra.mxu0 %v1380
    %1446 = vmatprep.subr.bf16.mxu0 %v1383
    %1447 = vmatpush1.bf16.msra.mxu0 %v1382
    %1448 = vmatprep.subr.bf16.mxu0 %v1385
    %1449 = vmatpush1.bf16.msra.mxu0 %v1384
    %1450 = vmatprep.subr.bf16.mxu0 %v1387
    %1451 = vmatpush1.bf16.msra.mxu0 %v1386
    %1452 = vmatprep.subr.bf16.mxu0 %v1389
    %1453 = vmatpush1.bf16.msra.mxu0 %v1388
    %1454 = vmatprep.subr.bf16.mxu0 %v1391
    %1455 = vmatpush1.bf16.msra.mxu0 %v1390
    %1456 = vmatprep.mubr.bf16.mxu0 %v1223
    %1457 = vmatmul.mubr.bf16.gmra.mrb[0].mxu0 %v1222
    %v1458 = vpop.f32.mrb[0].mxu0
    %v1459 = vadd.f32 %v1259, %v1458
    %v1460 = vpop.f32.mrb[0].mxu0
    %v1461 = vadd.f32 %v1263, %v1460
    %v1462 = vpop.f32.mrb[0].mxu0
    %v1463 = vpop.f32.mrb[0].mxu0
    %1464 = vdwg.mxu0
    %v1465 = vmax.f32 %v1459, 0.0
    %v1466 = vmax.f32 %v1461, 0.0
    %v1467 = vpack.c.bf16 %v1465, %v1465
    %v1468 = vpack.c.bf16 %v1466, %v1466
    %v1469 = vld [vmem:[#allocation2 + $0x480] sm:$0xff]
    %v1470 = vld [vmem:[#allocation2 + $0x488] sm:$0xff]
    %v1471 = vld [vmem:[#allocation2 + $0x490] sm:$0xff]
    %v1472 = vld [vmem:[#allocation2 + $0x498] sm:$0xff]
    %v1473 = vld [vmem:[#allocation2 + $0x4a0] sm:$0xff]
    %v1474 = vld [vmem:[#allocation2 + $0x4a8] sm:$0xff]
    %v1475 = vld [vmem:[#allocation2 + $0x4b0] sm:$0xff]
    %v1476 = vld [vmem:[#allocation2 + $0x4b8] sm:$0xff]
    %v1477 = vld [vmem:[#allocation2 + $0x4c0] sm:$0xff]
    %v1478 = vld [vmem:[#allocation2 + $0x4c8] sm:$0xff]
    %v1479 = vld [vmem:[#allocation2 + $0x4d0] sm:$0xff]
    %v1480 = vld [vmem:[#allocation2 + $0x4d8] sm:$0xff]
    %v1481 = vld [vmem:[#allocation2 + $0x4e0] sm:$0xff]
    %v1482 = vld [vmem:[#allocation2 + $0x4e8] sm:$0xff]
    %v1483 = vld [vmem:[#allocation2 + $0x4f0] sm:$0xff]
    %v1484 = vld [vmem:[#allocation2 + $0x4f8] sm:$0xff]
    %v1485 = vld [vmem:[#allocation2 + $0x500] sm:$0xff]
    %v1486 = vld [vmem:[#allocation2 + $0x508] sm:$0xff]
    %v1487 = vld [vmem:[#allocation2 + $0x510] sm:$0xff]
    %v1488 = vld [vmem:[#allocation2 + $0x518] sm:$0xff]
    %v1489 = vld [vmem:[#allocation2 + $0x520] sm:$0xff]
    %v1490 = vld [vmem:[#allocation2 + $0x528] sm:$0xff]
    %v1491 = vld [vmem:[#allocation2 + $0x530] sm:$0xff]
    %v1492 = vld [vmem:[#allocation2 + $0x538] sm:$0xff]
    %v1493 = vld [vmem:[#allocation2 + $0x540] sm:$0xff]
    %v1494 = vld [vmem:[#allocation2 + $0x548] sm:$0xff]
    %v1495 = vld [vmem:[#allocation2 + $0x550] sm:$0xff]
    %v1496 = vld [vmem:[#allocation2 + $0x558] sm:$0xff]
    %v1497 = vld [vmem:[#allocation2 + $0x560] sm:$0xff]
    %v1498 = vld [vmem:[#allocation2 + $0x568] sm:$0xff]
    %v1499 = vld [vmem:[#allocation2 + $0x570] sm:$0xff]
    %v1500 = vld [vmem:[#allocation2 + $0x578] sm:$0xff]
    %v1501 = vlaneseq
    %v1502 = vshrl.u32 %v1501, 7
    %v1503 = vsub.s32 4, %v1502
    %v1504 = vrot.slane %v414, %v1503
    %v1505 = vlaneseq
    %v1506 = vshrl.u32 %v1505, 7
    %v1507 = vsub.s32 4, %v1506
    %v1508 = vrot.slane %v415, %v1507
    %v1541 = vunpack.c.l.b16 %v1469
    %v1542 = vunpack.c.h.b16 %v1469
    %v1543 = vunpack.c.l.b16 %v1470
    %v1544 = vunpack.c.h.b16 %v1470
    %v1545 = vunpack.c.l.b16 %v1471
    %v1546 = vunpack.c.h.b16 %v1471
    %v1547 = vunpack.c.l.b16 %v1472
    %v1548 = vunpack.c.h.b16 %v1472
    %v1549 = vunpack.c.l.b16 %v1473
    %v1550 = vunpack.c.h.b16 %v1473
    %v1551 = vunpack.c.l.b16 %v1474
    %v1552 = vunpack.c.h.b16 %v1474
    %v1553 = vunpack.c.l.b16 %v1475
    %v1554 = vunpack.c.h.b16 %v1475
    %v1555 = vunpack.c.l.b16 %v1476
    %v1556 = vunpack.c.h.b16 %v1476
    %v1557 = vunpack.c.l.b16 %v1477
    %v1558 = vunpack.c.h.b16 %v1477
    %v1559 = vunpack.c.l.b16 %v1478
    %v1560 = vunpack.c.h.b16 %v1478
    %v1561 = vunpack.c.l.b16 %v1479
    %v1562 = vunpack.c.h.b16 %v1479
    %v1563 = vunpack.c.l.b16 %v1480
    %v1564 = vunpack.c.h.b16 %v1480
    %v1565 = vunpack.c.l.b16 %v1481
    %v1566 = vunpack.c.h.b16 %v1481
    %v1567 = vunpack.c.l.b16 %v1482
    %v1568 = vunpack.c.h.b16 %v1482
    %v1569 = vunpack.c.l.b16 %v1483
    %v1570 = vunpack.c.h.b16 %v1483
    %v1571 = vunpack.c.l.b16 %v1484
    %v1572 = vunpack.c.h.b16 %v1484
    %v1573 = vunpack.c.l.b16 %v1485
    %v1574 = vunpack.c.h.b16 %v1485
    %v1575 = vunpack.c.l.b16 %v1486
    %v1576 = vunpack.c.h.b16 %v1486
    %v1577 = vunpack.c.l.b16 %v1487
    %v1578 = vunpack.c.h.b16 %v1487
    %v1579 = vunpack.c.l.b16 %v1488
    %v1580 = vunpack.c.h.b16 %v1488
    %v1581 = vunpack.c.l.b16 %v1489
    %v1582 = vunpack.c.h.b16 %v1489
    %v1583 = vunpack.c.l.b16 %v1490
    %v1584 = vunpack.c.h.b16 %v1490
    %v1585 = vunpack.c.l.b16 %v1491
    %v1586 = vunpack.c.h.b16 %v1491
    %v1587 = vunpack.c.l.b16 %v1492
    %v1588 = vunpack.c.h.b16 %v1492
    %v1589 = vunpack.c.l.b16 %v1493
    %v1590 = vunpack.c.h.b16 %v1493
    %v1591 = vunpack.c.l.b16 %v1494
    %v1592 = vunpack.c.h.b16 %v1494
    %v1593 = vunpack.c.l.b16 %v1495
    %v1594 = vunpack.c.h.b16 %v1495
    %v1595 = vunpack.c.l.b16 %v1496
    %v1596 = vunpack.c.h.b16 %v1496
    %v1597 = vunpack.c.l.b16 %v1497
    %v1598 = vunpack.c.h.b16 %v1497
    %v1599 = vunpack.c.l.b16 %v1498
    %v1600 = vunpack.c.h.b16 %v1498
    %v1601 = vunpack.c.l.b16 %v1499
    %v1602 = vunpack.c.h.b16 %v1499
    %v1603 = vunpack.c.l.b16 %v1500
    %v1604 = vunpack.c.h.b16 %v1500
    %v1605 = vpack.c.b16 %v1543, %v1541
    %v1606 = vpack.c.b16 %v1544, %v1542
    %v1607 = vpack.c.b16 %v1547, %v1545
    %v1608 = vpack.c.b16 %v1548, %v1546
    %v1609 = vpack.c.b16 %v1551, %v1549
    %v1610 = vpack.c.b16 %v1552, %v1550
    %v1611 = vpack.c.b16 %v1555, %v1553
    %v1612 = vpack.c.b16 %v1556, %v1554
    %v1613 = vpack.c.b16 %v1559, %v1557
    %v1614 = vpack.c.b16 %v1560, %v1558
    %v1615 = vpack.c.b16 %v1563, %v1561
    %v1616 = vpack.c.b16 %v1564, %v1562
    %v1617 = vpack.c.b16 %v1567, %v1565
    %v1618 = vpack.c.b16 %v1568, %v1566
    %v1619 = vpack.c.b16 %v1571, %v1569
    %v1620 = vpack.c.b16 %v1572, %v1570
    %v1621 = vpack.c.b16 %v1575, %v1573
    %v1622 = vpack.c.b16 %v1576, %v1574
    %v1623 = vpack.c.b16 %v1579, %v1577
    %v1624 = vpack.c.b16 %v1580, %v1578
    %v1625 = vpack.c.b16 %v1583, %v1581
    %v1626 = vpack.c.b16 %v1584, %v1582
    %v1627 = vpack.c.b16 %v1587, %v1585
    %v1628 = vpack.c.b16 %v1588, %v1586
    %v1629 = vpack.c.b16 %v1591, %v1589
    %v1630 = vpack.c.b16 %v1592, %v1590
    %v1631 = vpack.c.b16 %v1595, %v1593
    %v1632 = vpack.c.b16 %v1596, %v1594
    %v1633 = vpack.c.b16 %v1599, %v1597
    %v1634 = vpack.c.b16 %v1600, %v1598
    %v1635 = vpack.c.b16 %v1603, %v1601
    %v1636 = vpack.c.b16 %v1604, %v1602
    %1669 = vmatprep.subr.bf16.mxu0 %v1606
    %1670 = vmatpush1.bf16.msra.mxu0 %v1605
    %1671 = vmatprep.subr.bf16.mxu0 %v1608
    %1672 = vmatpush1.bf16.msra.mxu0 %v1607
    %1673 = vmatprep.subr.bf16.mxu0 %v1610
    %1674 = vmatpush1.bf16.msra.mxu0 %v1609
    %1675 = vmatprep.subr.bf16.mxu0 %v1612
    %1676 = vmatpush1.bf16.msra.mxu0 %v1611
    %1677 = vmatprep.subr.bf16.mxu0 %v1614
    %1678 = vmatpush1.bf16.msra.mxu0 %v1613
    %1679 = vmatprep.subr.bf16.mxu0 %v1616
    %1680 = vmatpush1.bf16.msra.mxu0 %v1615
    %1681 = vmatprep.subr.bf16.mxu0 %v1618
    %1682 = vmatpush1.bf16.msra.mxu0 %v1617
    %1683 = vmatprep.subr.bf16.mxu0 %v1620
    %1684 = vmatpush1.bf16.msra.mxu0 %v1619
    %1685 = vmatprep.subr.bf16.mxu0 %v1622
    %1686 = vmatpush1.bf16.msra.mxu0 %v1621
    %1687 = vmatprep.subr.bf16.mxu0 %v1624
    %1688 = vmatpush1.bf16.msra.mxu0 %v1623
    %1689 = vmatprep.subr.bf16.mxu0 %v1626
    %1690 = vmatpush1.bf16.msra.mxu0 %v1625
    %1691 = vmatprep.subr.bf16.mxu0 %v1628
    %1692 = vmatpush1.bf16.msra.mxu0 %v1627
    %1693 = vmatprep.subr.bf16.mxu0 %v1630
    %1694 = vmatpush1.bf16.msra.mxu0 %v1629
    %1695 = vmatprep.subr.bf16.mxu0 %v1632
    %1696 = vmatpush1.bf16.msra.mxu0 %v1631
    %1697 = vmatprep.subr.bf16.mxu0 %v1634
    %1698 = vmatpush1.bf16.msra.mxu0 %v1633
    %1699 = vmatprep.subr.bf16.mxu0 %v1636
    %1700 = vmatpush1.bf16.msra.mxu0 %v1635
    %1701 = vmatprep.mubr.bf16.mxu0 %v1468
    %1702 = vmatmul.mubr.bf16.gmra.mrb[0].mxu0 %v1467
    %v1703 = vpop.f32.mrb[0].mxu0
    %v1704 = vadd.f32 %v1504, %v1703
    %v1705 = vpop.f32.mrb[0].mxu0
    %v1706 = vadd.f32 %v1508, %v1705
    %v1707 = vpop.f32.mrb[0].mxu0
    %v1708 = vpop.f32.mrb[0].mxu0
    %1709 = vdwg.mxu0
    %1710 = vst [vmem:[#allocation5] sm:$0xff] %v1704
    %1711 = vst [vmem:[#allocation5 + $0x8] sm:$0xff] %v1706
    // Predicated region
    $region18: #{tpu_custom_call.1} parent=1 // pred_check
      _
    $region19: #{tpu_custom_call.1} parent=1 // pred_check_branch
      %1713 = sbr.rel (0) target = $region21
    $region20: #{tpu_custom_call.1} parent=1 // pred_region
      %s1715 = ssub.s32 256, 256
      %1716 = vsyncadd [#allocation4], %s1715
      %s1718 = sshll.u32 [#allocation5], 4
      %s1719 = int_to_ptr.vmem [resolvable:$true] %s1718
      %1721 = dma.vmem_to_hbm [thread:$0]  %s1719, 256, %s3, [#allocation4]
    $region21: #{tpu_custom_call.1} parent=1 // pred_fallthru
      _
    // Predicated region
    $region22: #{tpu_custom_call.1} parent=1 // pred_check
      _
    $region23: #{tpu_custom_call.1} parent=1 // pred_check_branch
      %1723 = sbr.rel (0) target = $region25
    $region24: #{tpu_custom_call.1} parent=1 // pred_region
      %1724 = dma.done [#allocation4], 256
    $region25: #{tpu_custom_call.1} parent=1 // pred_fallthru
      _
    %1725 = vsyncpa [#allocation3], 1
    %1726 = vsyncpa [#allocation4], 1

</llo_original>
